<compile_context>
chip_gen: v6e
topology: v6e:2x2x1
jax: 0.10.0
libtpu: 0.0.40
codegen_flags: <defaults>
</compile_context>

<pallas_src>
import functools

import jax
import jax.numpy as jnp
from jax.experimental import pallas as pl
from jax.experimental.pallas import tpu as pltpu


# ----------------------------- VMEM / tiling helpers -----------------------------

@functools.lru_cache(maxsize=1)
def _vmem_limit_bytes():
    """Scoped-VMEM request derived from the chip's physical VMEM."""
    cap = 64 * 1024 * 1024
    try:
        cap = int(pltpu.get_tpu_info().vmem_capacity_bytes)
    except Exception:
        pass
    return max(32 * 1024 * 1024, min(cap // 2, 96 * 1024 * 1024))


def _pick_spatial_tile(whp, bytes_per_col, budget, cap=2048):
    """Largest multiple of 128 dividing whp with tile bytes under budget."""
    best = 128
    m = 256
    while m <= min(whp, cap):
        if whp % m == 0 and m * bytes_per_col <= budget:
            best = m
        m += 128
    return best


def _pad_spatial(x, whp):
    pad = whp - x.shape[-1]
    if pad:
        x = jnp.pad(x, ((0, 0), (0, 0), (0, pad)))
    return x


# ----------------------------- Pallas kernels -----------------------------

def _dsc_main_kernel(vals_ref, coords_ref, wm_ref, bias_ref, y_ref, stats_ref,
                     *, num_ch, ksize, max_y, max_x):
    # vals_ref:   [1, 4*K*C, t] bf16, row = corner*(K*C) + k*C + c
    # coords_ref: [1, 2K, t]    f32, rows 0..K-1 = y coords, K..2K-1 = x coords
    # wm_ref:     [Cout, K*C]   bf16 (column order k*C + c)
    # bias_ref:   [Cout, 1]     f32
    # y_ref:      [1, Cout, t]  bf16 (lane-dense store)
    # stats_ref:  [1, Cout, 2]  f32 accumulator (sum, sumsq) over spatial tiles
    t_idx = pl.program_id(1)
    C, K = num_ch, ksize
    KC = K * C

    coords = coords_ref[0]                      # [2K, t] f32
    cy = coords[0:K]                            # [K, t]
    cx = coords[K:2 * K]

    # Bilinear weights computed in-kernel (reference semantics: clamp to max+1).
    y0 = jnp.floor(cy)
    y1 = y0 + 1.0
    x0 = jnp.floor(cx)
    x1 = x0 + 1.0
    y0f = jnp.clip(y0, 0.0, max_y + 1.0)
    y1f = jnp.clip(y1, 0.0, max_y + 1.0)
    x0f = jnp.clip(x0, 0.0, max_x + 1.0)
    x1f = jnp.clip(x1, 0.0, max_x + 1.0)
    wa0 = (y1f - cy) * (x1f - cx)
    wc0 = (y1f - cy) * (cx - x0f)
    wa1 = (cy - y0f) * (x1f - cx)
    wc1 = (cy - y0f) * (cx - x0f)

    vals = vals_ref[0]                          # [4*K*C, t] bf16 (single load)

    # Bilinear combine per kernel-point k; [1,t] weight row broadcasts over the
    # contiguous [C,t] channel slice (no jnp.tile materialization).
    df_parts = []
    for k in range(K):
        va0 = vals[0 * KC + k * C: 0 * KC + (k + 1) * C, :].astype(jnp.float32)
        vc0 = vals[1 * KC + k * C: 1 * KC + (k + 1) * C, :].astype(jnp.float32)
        va1 = vals[2 * KC + k * C: 2 * KC + (k + 1) * C, :].astype(jnp.float32)
        vc1 = vals[3 * KC + k * C: 3 * KC + (k + 1) * C, :].astype(jnp.float32)
        dk = (va0 * wa0[k:k + 1, :] + vc0 * wc0[k:k + 1, :]
              + va1 * wa1[k:k + 1, :] + vc1 * wc1[k:k + 1, :])
        df_parts.append(dk)
    df = jnp.concatenate(df_parts, axis=0)      # [K*C, t] f32

    # Snake conv as matmul: [Cout, K*C] @ [K*C, t] -> [Cout, t], f32 accumulate.
    out = jnp.dot(wm_ref[...], df.astype(jnp.bfloat16),
                  preferred_element_type=jnp.float32)
    out = out + bias_ref[...]
    y_ref[0] = out.astype(y_ref.dtype)

    # Per-channel sum / sumsq for GroupNorm, accumulated across spatial tiles.
    @pl.when(t_idx == 0)
    def _():
        stats_ref[...] = jnp.zeros_like(stats_ref)

    stats_ref[0, :, 0:1] += jnp.sum(out, axis=1, keepdims=True)
    stats_ref[0, :, 1:2] += jnp.sum(out * out, axis=1, keepdims=True)


def _gn_silu_kernel(y_ref, sc_ref, sh_ref, out_ref):
    # y: [1, Cout, t] bf16; sc/sh: [1, Cout, 1] f32; out: [1, Cout, t] f32
    y = y_ref[0].astype(jnp.float32) * sc_ref[0] + sh_ref[0]
    out_ref[0] = (y * jax.nn.sigmoid(y)).astype(out_ref.dtype)


# ----------------------------- pallas_call wrappers -----------------------------

def dsc_main(vals, coords, w_mat, bias, *, num_ch, ksize, max_y, max_x):
    B, R, WHp = vals.shape            # R = 4*K*C
    K2 = coords.shape[1]              # 2K
    c_out = w_mat.shape[0]
    KC = R // 4
    limit = _vmem_limit_bytes()
    # per-column VMEM bytes: double-buffered streams + in-kernel f32 temps
    bytes_per_col = (2 * (2 * R + 4 * K2 + 2 * c_out)        # in/out streams
                     + 6 * KC + 16 * num_ch + 8 * K2         # df + combine temps
                     + 8 * c_out)                            # out f32 + out*out
    t = _pick_spatial_tile(WHp, bytes_per_col, budget=limit // 2)
    kern = functools.partial(_dsc_main_kernel, num_ch=num_ch, ksize=ksize,
                             max_y=float(max_y), max_x=float(max_x))
    return pl.pallas_call(
        kern,
        out_shape=(jax.ShapeDtypeStruct((B, c_out, WHp), jnp.bfloat16),
                   jax.ShapeDtypeStruct((B, c_out, 2), jnp.float32)),
        grid=(B, WHp // t),
        in_specs=[
            pl.BlockSpec((1, R, t), lambda b, i: (b, 0, i)),
            pl.BlockSpec((1, K2, t), lambda b, i: (b, 0, i)),
            pl.BlockSpec((c_out, KC), lambda b, i: (0, 0)),
            pl.BlockSpec((c_out, 1), lambda b, i: (0, 0)),
        ],
        out_specs=(pl.BlockSpec((1, c_out, t), lambda b, i: (b, 0, i)),
                   pl.BlockSpec((1, c_out, 2), lambda b, i: (b, 0, 0))),
        compiler_params=pltpu.CompilerParams(
            dimension_semantics=("parallel", "arbitrary"),
            vmem_limit_bytes=limit),
    )(vals, coords, w_mat, bias)


def gn_silu_apply(y, scale, shift):
    B, c_out, WHp = y.shape
    limit = _vmem_limit_bytes()
    bytes_per_col = 2 * (2 * c_out + 4 * c_out) + 8 * c_out
    t = _pick_spatial_tile(WHp, bytes_per_col, budget=limit // 2)
    return pl.pallas_call(
        _gn_silu_kernel,
        out_shape=jax.ShapeDtypeStruct((B, c_out, WHp), jnp.float32),
        grid=(B, WHp // t),
        in_specs=[
            pl.BlockSpec((1, c_out, t), lambda b, i: (b, 0, i)),
            pl.BlockSpec((1, c_out, 1), lambda b, i: (b, 0, 0)),
            pl.BlockSpec((1, c_out, 1), lambda b, i: (b, 0, 0)),
        ],
        out_specs=pl.BlockSpec((1, c_out, t), lambda b, i: (b, 0, i)),
        compiler_params=pltpu.CompilerParams(
            dimension_semantics=("parallel", "parallel"),
            vmem_limit_bytes=limit),
    )(y, scale, shift)


# ----------------------------- plain-JAX glue -----------------------------

def _cumulative_offset(off, K):
    # Reproduces the reference loop exactly (no-op beyond zeroing the center
    # when K == 3, since range(1, center) is empty).
    center = K // 2
    parts = [off[:, k] for k in range(K)]
    new = list(parts)
    new[center] = jnp.zeros_like(parts[center])
    for index in range(1, center):
        new[center + index] = new[center + index - 1] + parts[center + index]
        new[center - index] = new[center - index + 1] + parts[center - index]
    return jnp.stack(new, axis=1)


def _coordinate_map(offset, K, W, H, extend_scope, morph, if_offset):
    # offset: [B, 2K, W, H] -> (y_new, x_new) coordinate maps, each [B, K, W, H]
    B = offset.shape[0]
    y_off = offset[:, :K]
    x_off = offset[:, K:2 * K]
    center = K // 2
    w_idx = jnp.arange(W, dtype=jnp.float32)
    h_idx = jnp.arange(H, dtype=jnp.float32)
    y_center = jnp.broadcast_to(w_idx[None, None, :, None], (B, K, W, H))
    x_center = jnp.broadcast_to(h_idx[None, None, None, :], (B, K, W, H))
    k_lin = jnp.linspace(-float(center), float(center), K)
    k_grid = jnp.broadcast_to(k_lin[None, :, None, None], (B, K, W, H))
    if morph == 0:
        y_new = y_center
        x_new = x_center + k_grid
        if if_offset:
            y_new = y_new + _cumulative_offset(y_off, K) * extend_scope
    else:
        y_new = y_center + k_grid
        x_new = x_center
        if if_offset:
            x_new = x_new + _cumulative_offset(x_off, K) * extend_scope
    return y_new, x_new


def _gather_corner_values(f, y_new, x_new):
    # f: [B, C, W, H]; y_new/x_new: [B, K, W, H]
    # returns packed corner values [B, 4*K*C, W*H], row = q*(K*C) + k*C + c
    B, C, W, H = f.shape
    K = y_new.shape[1]
    y = y_new.reshape(-1)
    x = x_new.reshape(-1)
    y0 = jnp.floor(y).astype(jnp.int32)
    y1 = y0 + 1
    x0 = jnp.floor(x).astype(jnp.int32)
    x1 = x0 + 1
    y0c = jnp.clip(y0, 0, W - 1)
    y1c = jnp.clip(y1, 0, W - 1)
    x0c = jnp.clip(x0, 0, H - 1)
    x1c = jnp.clip(x1, 0, H - 1)
    feat = jnp.transpose(f, (0, 2, 3, 1)).reshape(-1, C)
    # Faithful to reference: batch base cancels -> all batches gather batch 0.
    # TODO(synk): replace with an in-kernel DMA row gather to avoid these
    #             materialized HBM intermediates.
    def take(idx):
        v = jnp.take(feat, idx, axis=0)                 # [B*K*W*H, C]
        v = v.reshape(B, K, W * H, C)
        return jnp.transpose(v, (0, 1, 3, 2)).reshape(B, K * C, W * H)
    va0 = take(y0c * H + x0c)
    vc0 = take(y0c * H + x1c)
    va1 = take(y1c * H + x0c)
    vc1 = take(y1c * H + x1c)
    return jnp.concatenate([va0, vc0, va1, vc1], axis=1)


def _offset_head(f, w, scale, shift):
    # 3x3 "same" conv (pad=1) with folded conv-bias + BatchNorm, then tanh.
    # Done in XLA (review option (b)): avoids the 9x im2col HBM amplification.
    y = jax.lax.conv_general_dilated(
        f, w, window_strides=(1, 1), padding=((1, 1), (1, 1)),
        dimension_numbers=("NCHW", "OIHW", "NCHW"))
    y = y * scale[None, :, None, None] + shift[None, :, None, None]
    return jnp.tanh(y)


# ----------------------------- DSConv forward -----------------------------

def init_dsconv_params(key, in_ch, out_ch, K=3):
    ks = jax.random.split(key, 12)
    p = {}
    p["off_w"] = 0.1 * jax.random.normal(ks[0], (2 * K, in_ch, 3, 3), jnp.float32)
    p["off_b"] = 0.05 * jax.random.normal(ks[1], (2 * K,), jnp.float32)
    p["bn_gamma"] = 1.0 + 0.1 * jax.random.normal(ks[2], (2 * K,), jnp.float32)
    p["bn_beta"] = 0.05 * jax.random.normal(ks[3], (2 * K,), jnp.float32)
    p["bn_mean"] = 0.05 * jax.random.normal(ks[4], (2 * K,), jnp.float32)
    p["bn_var"] = 0.5 + 0.5 * jnp.abs(jax.random.normal(ks[5], (2 * K,), jnp.float32))
    p["dscx_w"] = 0.1 * jax.random.normal(ks[6], (out_ch, in_ch, K, 1), jnp.float32)
    p["dscx_b"] = 0.05 * jax.random.normal(ks[7], (out_ch,), jnp.float32)
    p["dscy_w"] = 0.1 * jax.random.normal(ks[8], (out_ch, in_ch, 1, K), jnp.float32)
    p["dscy_b"] = 0.05 * jax.random.normal(ks[9], (out_ch,), jnp.float32)
    p["gn_gamma"] = 1.0 + 0.1 * jax.random.normal(ks[10], (out_ch,), jnp.float32)
    p["gn_beta"] = 0.05 * jax.random.normal(ks[11], (out_ch,), jnp.float32)
    return p


def dsconv_forward(params, f, *, morph, kernel_size=3, if_offset=True,
                   extend_scope=1.0):
    B, C, W, H = f.shape
    K = kernel_size
    WH = W * H

    # ---- offset branch: conv + folded BN + tanh (XLA, inference BN) ----
    bn_eps = 1e-5
    bn_scale = params["bn_gamma"] / jnp.sqrt(params["bn_var"] + bn_eps)
    bn_shift = (params["off_b"] - params["bn_mean"]) * bn_scale + params["bn_beta"]
    offset = _offset_head(f, params["off_w"], bn_scale, bn_shift)    # [B, 2K, W, H]

    # ---- deformable coordinate maps + bilinear corner gather (glue) ----
    y_new, x_new = _coordinate_map(offset, K, W, H, extend_scope, morph, if_offset)
    vals = _gather_corner_values(f, y_new, x_new)                    # [B, 4KC, WH]
    coords = jnp.concatenate([y_new.reshape(B, K, WH),
                              x_new.reshape(B, K, WH)], axis=1)      # [B, 2K, WH]

    # snake conv weights (column order k*C + c to match the value row order)
    if morph == 0:
        w_dsc = params["dscx_w"][:, :, :, 0]                         # [Cout, C, K]
        b_dsc = params["dscx_b"]
    else:
        w_dsc = params["dscy_w"][:, :, 0, :]                         # [Cout, C, K]
        b_dsc = params["dscy_b"]
    out_ch = b_dsc.shape[0]
    w_mat = jnp.transpose(w_dsc, (0, 2, 1)).reshape(out_ch, K * C).astype(jnp.bfloat16)

    # pad the spatial dim to a multiple of 128 for lane-dense tiles
    WHp = ((WH + 127) // 128) * 128
    n_pad = WHp - WH
    vals = _pad_spatial(vals, WHp).astype(jnp.bfloat16)
    coords = _pad_spatial(coords, WHp)

    # ---- bilinear combine + snake conv + per-channel stats (Pallas) ----
    y_bf16, stats = dsc_main(vals, coords, w_mat, b_dsc[:, None],
                             num_ch=C, ksize=K, max_y=W - 1, max_x=H - 1)

    # ---- GroupNorm stats finalize (tiny, plain JAX) ----
    gn_eps = 1e-5
    sum_c = stats[..., 0]
    sq_c = stats[..., 1]
    if n_pad:
        # padded columns contribute exactly `bias` each (values & coords are 0)
        sum_c = sum_c - n_pad * b_dsc[None, :]
        sq_c = sq_c - n_pad * (b_dsc * b_dsc)[None, :]
    G = out_ch // 4
    cg = out_ch // G
    n = jnp.float32(WH * cg)
    sum_g = sum_c.reshape(B, G, cg).sum(-1)
    sq_g = sq_c.reshape(B, G, cg).sum(-1)
    mean_g = sum_g / n
    var_g = jnp.maximum(sq_g / n - mean_g * mean_g, 0.0)
    rstd_g = jax.lax.rsqrt(var_g + gn_eps)
    mean_ch = jnp.repeat(mean_g, cg, axis=1)                         # [B, Cout]
    rstd_ch = jnp.repeat(rstd_g, cg, axis=1)
    gn_scale = params["gn_gamma"][None, :] * rstd_ch
    gn_shift = params["gn_beta"][None, :] - mean_ch * gn_scale

    # ---- GroupNorm apply + SiLU (Pallas) ----
    out = gn_silu_apply(y_bf16, gn_scale[:, :, None], gn_shift[:, :, None])
    if n_pad:
        out = out[:, :, :WH]
    return out.reshape(B, out_ch, W, H)


# ----------------------------- demo -----------------------------

if __name__ == "__main__":
    key = jax.random.PRNGKey(0)
    kx, kp = jax.random.split(key)
    B, C_in, W, H = 2, 4, 16, 16
    out_ch = 8
    assert out_ch % 4 == 0  # GroupNorm(out_ch // 4, out_ch) requirement
    f = jax.random.normal(kx, (B, C_in, W, H), jnp.float32)
    params = init_dsconv_params(kp, C_in, out_ch, K=3)

    fwd0 = jax.jit(functools.partial(dsconv_forward, morph=0))
    fwd1 = jax.jit(functools.partial(dsconv_forward, morph=1))
    out_morph0 = fwd0(params, f)
    out_morph1 = fwd1(params, f)
    jax.block_until_ready((out_morph0, out_morph1))

    assert out_morph0.shape == (B, out_ch, W, H)
    assert out_morph1.shape == (B, out_ch, W, H)
    assert bool(jnp.all(jnp.isfinite(out_morph0)))
    assert bool(jnp.all(jnp.isfinite(out_morph1)))
    print("KERNEL_OK")
</pallas_src>

<mosaic_0001>
module attributes {stable_mosaic.version = 11 : i64} {
  func.func @_dsc_main_kernel(%arg0: i32, %arg1: i32, %arg2: memref<1x48x256xbf16, #tpu.memory_space<vmem>>, %arg3: memref<1x6x256xf32, #tpu.memory_space<vmem>>, %arg4: memref<8x12xbf16, #tpu.memory_space<vmem>>, %arg5: memref<8x1xf32, #tpu.memory_space<vmem>>, %arg6: memref<1x8x256xbf16, #tpu.memory_space<vmem>>, %arg7: memref<1x8x2xf32, #tpu.memory_space<vmem>>) attributes {dimension_semantics = [#tpu.dimension_semantics<parallel>, #tpu.dimension_semantics<arbitrary>], iteration_bounds = array<i64: 2, 1>, scalar_prefetch = 0 : i64, scratch_operands = 0 : i64, tpu.core_type = #tpu.core_type<tc>, window_params = [{transform_indices = @transform_0, window_bounds = array<i64: 1, 48, 256>}, {transform_indices = @transform_1, window_bounds = array<i64: 1, 6, 256>}, {pipeline_mode = #tpu.pipeline_mode<synchronous>, transform_indices = @transform_2, window_bounds = array<i64: 8, 12>}, {pipeline_mode = #tpu.pipeline_mode<synchronous>, transform_indices = @transform_3, window_bounds = array<i64: 8, 1>}, {transform_indices = @transform_4, window_bounds = array<i64: 1, 8, 256>}, {transform_indices = @transform_5, window_bounds = array<i64: 1, 8, 2>}]} {
    %c0 = arith.constant 0 : index
    %c0_0 = arith.constant 0 : index
    %c0_1 = arith.constant 0 : index
    %0 = vector.load %arg3[%c0, %c0_0, %c0_1] : memref<1x6x256xf32, #tpu.memory_space<vmem>>, vector<1x6x256xf32>
    %1 = vector.shape_cast %0 : vector<1x6x256xf32> to vector<6x256xf32>
    %2 = vector.extract_strided_slice %1 {offsets = [0, 0], sizes = [3, 256], strides = [1, 1]} : vector<6x256xf32> to vector<3x256xf32>
    %3 = vector.extract_strided_slice %1 {offsets = [3, 0], sizes = [3, 256], strides = [1, 1]} : vector<6x256xf32> to vector<3x256xf32>
    %4 = math.floor %2 : vector<3x256xf32>
    %cst = arith.constant 1.000000e+00 : f32
    %5 = vector.broadcast %cst : f32 to vector<3x256xf32>
    %6 = arith.addf %4, %5 : vector<3x256xf32>
    %7 = math.floor %3 : vector<3x256xf32>
    %cst_2 = arith.constant 1.000000e+00 : f32
    %8 = vector.broadcast %cst_2 : f32 to vector<3x256xf32>
    %9 = arith.addf %7, %8 : vector<3x256xf32>
    %cst_3 = arith.constant 0.000000e+00 : f32
    %cst_4 = arith.constant 1.600000e+01 : f32
    %10 = vector.broadcast %cst_3 : f32 to vector<3x256xf32>
    %11 = arith.maximumf %10, %4 : vector<3x256xf32>
    %12 = vector.broadcast %cst_4 : f32 to vector<3x256xf32>
    %13 = arith.minimumf %12, %11 : vector<3x256xf32>
    %cst_5 = arith.constant 0.000000e+00 : f32
    %cst_6 = arith.constant 1.600000e+01 : f32
    %14 = vector.broadcast %cst_5 : f32 to vector<3x256xf32>
    %15 = arith.maximumf %14, %6 : vector<3x256xf32>
    %16 = vector.broadcast %cst_6 : f32 to vector<3x256xf32>
    %17 = arith.minimumf %16, %15 : vector<3x256xf32>
    %cst_7 = arith.constant 0.000000e+00 : f32
    %cst_8 = arith.constant 1.600000e+01 : f32
    %18 = vector.broadcast %cst_7 : f32 to vector<3x256xf32>
    %19 = arith.maximumf %18, %7 : vector<3x256xf32>
    %20 = vector.broadcast %cst_8 : f32 to vector<3x256xf32>
    %21 = arith.minimumf %20, %19 : vector<3x256xf32>
    %cst_9 = arith.constant 0.000000e+00 : f32
    %cst_10 = arith.constant 1.600000e+01 : f32
    %22 = vector.broadcast %cst_9 : f32 to vector<3x256xf32>
    %23 = arith.maximumf %22, %9 : vector<3x256xf32>
    %24 = vector.broadcast %cst_10 : f32 to vector<3x256xf32>
    %25 = arith.minimumf %24, %23 : vector<3x256xf32>
    %26 = arith.subf %17, %2 : vector<3x256xf32>
    %27 = arith.subf %25, %3 : vector<3x256xf32>
    %28 = arith.mulf %26, %27 : vector<3x256xf32>
    %29 = arith.subf %17, %2 : vector<3x256xf32>
    %30 = arith.subf %3, %21 : vector<3x256xf32>
    %31 = arith.mulf %29, %30 : vector<3x256xf32>
    %32 = arith.subf %2, %13 : vector<3x256xf32>
    %33 = arith.subf %25, %3 : vector<3x256xf32>
    %34 = arith.mulf %32, %33 : vector<3x256xf32>
    %35 = arith.subf %2, %13 : vector<3x256xf32>
    %36 = arith.subf %3, %21 : vector<3x256xf32>
    %37 = arith.mulf %35, %36 : vector<3x256xf32>
    %c0_11 = arith.constant 0 : index
    %c0_12 = arith.constant 0 : index
    %c0_13 = arith.constant 0 : index
    %38 = vector.load %arg2[%c0_11, %c0_12, %c0_13] : memref<1x48x256xbf16, #tpu.memory_space<vmem>>, vector<1x48x256xbf16>
    %39 = vector.shape_cast %38 : vector<1x48x256xbf16> to vector<48x256xbf16>
    %40 = vector.extract_strided_slice %39 {offsets = [0, 0], sizes = [4, 256], strides = [1, 1]} : vector<48x256xbf16> to vector<4x256xbf16>
    %41 = arith.extf %40 : vector<4x256xbf16> to vector<4x256xf32>
    %42 = vector.extract_strided_slice %39 {offsets = [12, 0], sizes = [4, 256], strides = [1, 1]} : vector<48x256xbf16> to vector<4x256xbf16>
    %43 = arith.extf %42 : vector<4x256xbf16> to vector<4x256xf32>
    %44 = vector.extract_strided_slice %39 {offsets = [24, 0], sizes = [4, 256], strides = [1, 1]} : vector<48x256xbf16> to vector<4x256xbf16>
    %45 = arith.extf %44 : vector<4x256xbf16> to vector<4x256xf32>
    %46 = vector.extract_strided_slice %39 {offsets = [36, 0], sizes = [4, 256], strides = [1, 1]} : vector<48x256xbf16> to vector<4x256xbf16>
    %47 = arith.extf %46 : vector<4x256xbf16> to vector<4x256xf32>
    %48 = vector.extract_strided_slice %28 {offsets = [0, 0], sizes = [1, 256], strides = [1, 1]} : vector<3x256xf32> to vector<1x256xf32>
    %49 = vector.broadcast %48 : vector<1x256xf32> to vector<4x256xf32>
    %50 = arith.mulf %41, %49 : vector<4x256xf32>
    %51 = vector.extract_strided_slice %31 {offsets = [0, 0], sizes = [1, 256], strides = [1, 1]} : vector<3x256xf32> to vector<1x256xf32>
    %52 = vector.broadcast %51 : vector<1x256xf32> to vector<4x256xf32>
    %53 = arith.mulf %43, %52 : vector<4x256xf32>
    %54 = arith.addf %50, %53 : vector<4x256xf32>
    %55 = vector.extract_strided_slice %34 {offsets = [0, 0], sizes = [1, 256], strides = [1, 1]} : vector<3x256xf32> to vector<1x256xf32>
    %56 = vector.broadcast %55 : vector<1x256xf32> to vector<4x256xf32>
    %57 = arith.mulf %45, %56 : vector<4x256xf32>
    %58 = arith.addf %54, %57 : vector<4x256xf32>
    %59 = vector.extract_strided_slice %37 {offsets = [0, 0], sizes = [1, 256], strides = [1, 1]} : vector<3x256xf32> to vector<1x256xf32>
    %60 = vector.broadcast %59 : vector<1x256xf32> to vector<4x256xf32>
    %61 = arith.mulf %47, %60 : vector<4x256xf32>
    %62 = arith.addf %58, %61 : vector<4x256xf32>
    %63 = vector.extract_strided_slice %39 {offsets = [4, 0], sizes = [4, 256], strides = [1, 1]} : vector<48x256xbf16> to vector<4x256xbf16>
    %64 = arith.extf %63 : vector<4x256xbf16> to vector<4x256xf32>
    %65 = vector.extract_strided_slice %39 {offsets = [16, 0], sizes = [4, 256], strides = [1, 1]} : vector<48x256xbf16> to vector<4x256xbf16>
    %66 = arith.extf %65 : vector<4x256xbf16> to vector<4x256xf32>
    %67 = vector.extract_strided_slice %39 {offsets = [28, 0], sizes = [4, 256], strides = [1, 1]} : vector<48x256xbf16> to vector<4x256xbf16>
    %68 = arith.extf %67 : vector<4x256xbf16> to vector<4x256xf32>
    %69 = vector.extract_strided_slice %39 {offsets = [40, 0], sizes = [4, 256], strides = [1, 1]} : vector<48x256xbf16> to vector<4x256xbf16>
    %70 = arith.extf %69 : vector<4x256xbf16> to vector<4x256xf32>
    %71 = vector.extract_strided_slice %28 {offsets = [1, 0], sizes = [1, 256], strides = [1, 1]} : vector<3x256xf32> to vector<1x256xf32>
    %72 = vector.broadcast %71 : vector<1x256xf32> to vector<4x256xf32>
    %73 = arith.mulf %64, %72 : vector<4x256xf32>
    %74 = vector.extract_strided_slice %31 {offsets = [1, 0], sizes = [1, 256], strides = [1, 1]} : vector<3x256xf32> to vector<1x256xf32>
    %75 = vector.broadcast %74 : vector<1x256xf32> to vector<4x256xf32>
    %76 = arith.mulf %66, %75 : vector<4x256xf32>
    %77 = arith.addf %73, %76 : vector<4x256xf32>
    %78 = vector.extract_strided_slice %34 {offsets = [1, 0], sizes = [1, 256], strides = [1, 1]} : vector<3x256xf32> to vector<1x256xf32>
    %79 = vector.broadcast %78 : vector<1x256xf32> to vector<4x256xf32>
    %80 = arith.mulf %68, %79 : vector<4x256xf32>
    %81 = arith.addf %77, %80 : vector<4x256xf32>
    %82 = vector.extract_strided_slice %37 {offsets = [1, 0], sizes = [1, 256], strides = [1, 1]} : vector<3x256xf32> to vector<1x256xf32>
    %83 = vector.broadcast %82 : vector<1x256xf32> to vector<4x256xf32>
    %84 = arith.mulf %70, %83 : vector<4x256xf32>
    %85 = arith.addf %81, %84 : vector<4x256xf32>
    %86 = vector.extract_strided_slice %39 {offsets = [8, 0], sizes = [4, 256], strides = [1, 1]} : vector<48x256xbf16> to vector<4x256xbf16>
    %87 = arith.extf %86 : vector<4x256xbf16> to vector<4x256xf32>
    %88 = vector.extract_strided_slice %39 {offsets = [20, 0], sizes = [4, 256], strides = [1, 1]} : vector<48x256xbf16> to vector<4x256xbf16>
    %89 = arith.extf %88 : vector<4x256xbf16> to vector<4x256xf32>
    %90 = vector.extract_strided_slice %39 {offsets = [32, 0], sizes = [4, 256], strides = [1, 1]} : vector<48x256xbf16> to vector<4x256xbf16>
    %91 = arith.extf %90 : vector<4x256xbf16> to vector<4x256xf32>
    %92 = vector.extract_strided_slice %39 {offsets = [44, 0], sizes = [4, 256], strides = [1, 1]} : vector<48x256xbf16> to vector<4x256xbf16>
    %93 = arith.extf %92 : vector<4x256xbf16> to vector<4x256xf32>
    %94 = vector.extract_strided_slice %28 {offsets = [2, 0], sizes = [1, 256], strides = [1, 1]} : vector<3x256xf32> to vector<1x256xf32>
    %95 = vector.broadcast %94 : vector<1x256xf32> to vector<4x256xf32>
    %96 = arith.mulf %87, %95 : vector<4x256xf32>
    %97 = vector.extract_strided_slice %31 {offsets = [2, 0], sizes = [1, 256], strides = [1, 1]} : vector<3x256xf32> to vector<1x256xf32>
    %98 = vector.broadcast %97 : vector<1x256xf32> to vector<4x256xf32>
    %99 = arith.mulf %89, %98 : vector<4x256xf32>
    %100 = arith.addf %96, %99 : vector<4x256xf32>
    %101 = vector.extract_strided_slice %34 {offsets = [2, 0], sizes = [1, 256], strides = [1, 1]} : vector<3x256xf32> to vector<1x256xf32>
    %102 = vector.broadcast %101 : vector<1x256xf32> to vector<4x256xf32>
    %103 = arith.mulf %91, %102 : vector<4x256xf32>
    %104 = arith.addf %100, %103 : vector<4x256xf32>
    %105 = vector.extract_strided_slice %37 {offsets = [2, 0], sizes = [1, 256], strides = [1, 1]} : vector<3x256xf32> to vector<1x256xf32>
    %106 = vector.broadcast %105 : vector<1x256xf32> to vector<4x256xf32>
    %107 = arith.mulf %93, %106 : vector<4x256xf32>
    %108 = arith.addf %104, %107 : vector<4x256xf32>
    %109 = tpu.concatenate %62, %85, %108 in 0 : vector<4x256xf32>, vector<4x256xf32>, vector<4x256xf32> -> vector<12x256xf32>
    %c0_14 = arith.constant 0 : index
    %c0_15 = arith.constant 0 : index
    %110 = vector.load %arg4[%c0_14, %c0_15] : memref<8x12xbf16, #tpu.memory_space<vmem>>, vector<8x12xbf16>
    %111 = arith.truncf %109 : vector<12x256xf32> to vector<12x256xbf16>
    %cst_16 = arith.constant dense<0.000000e+00> : vector<8x256xf32>
    %112 = tpu.matmul %110, %111, %cst_16 {dimension_numbers = #tpu.dot_dimension_numbers<[1], [0], [0], [1], [0, 0, 1, 1], [], []>} : vector<8x12xbf16>, vector<12x256xbf16>, vector<8x256xf32> -> vector<8x256xf32>
    %c0_17 = arith.constant 0 : index
    %c0_18 = arith.constant 0 : index
    %113 = vector.load %arg5[%c0_17, %c0_18] : memref<8x1xf32, #tpu.memory_space<vmem>>, vector<8x1xf32>
    %114 = vector.broadcast %113 : vector<8x1xf32> to vector<8x256xf32>
    %115 = arith.addf %112, %114 : vector<8x256xf32>
    %116 = arith.truncf %115 : vector<8x256xf32> to vector<8x256xbf16>
    %c0_19 = arith.constant 0 : index
    %c0_20 = arith.constant 0 : index
    %c0_21 = arith.constant 0 : index
    %117 = vector.load %arg6[%c0_19, %c0_20, %c0_21] : memref<1x8x256xbf16, #tpu.memory_space<vmem>>, vector<1x8x256xbf16>
    %118 = vector.shape_cast %117 : vector<1x8x256xbf16> to vector<8x256xbf16>
    %119 = vector.shape_cast %116 : vector<8x256xbf16> to vector<1x8x256xbf16>
    tpu.vector_store %arg6[%c0_19, %c0_20, %c0_21], %119 {strides = array<i32>} : memref<1x8x256xbf16, #tpu.memory_space<vmem>>, vector<1x8x256xbf16>,
    %c0_i32 = arith.constant 0 : i32
    %120 = arith.cmpi eq, %arg1, %c0_i32 : i32
    %121 = arith.extui %120 : i1 to i32
    %c0_i32_22 = arith.constant 0 : i32
    %122 = arith.cmpi ne, %121, %c0_i32_22 : i32
    scf.if %122 {
      %cst_36 = arith.constant 0.000000e+00 : f32
      %140 = vector.broadcast %cst_36 : f32 to vector<1x8x2xf32>
      %c0_37 = arith.constant 0 : index
      %c0_38 = arith.constant 0 : index
      %c0_39 = arith.constant 0 : index
      %141 = vector.load %arg7[%c0_37, %c0_38, %c0_39] : memref<1x8x2xf32, #tpu.memory_space<vmem>>, vector<1x8x2xf32>
      tpu.vector_store %arg7[%c0_37, %c0_38, %c0_39], %140 {strides = array<i32>} : memref<1x8x2xf32, #tpu.memory_space<vmem>>, vector<1x8x2xf32>,
    } else {
    }
    %c0_23 = arith.constant 0 : index
    %c0_24 = arith.constant 0 : index
    %c0_25 = arith.constant 0 : index
    %123 = vector.load %arg7[%c0_23, %c0_24, %c0_25] : memref<1x8x2xf32, #tpu.memory_space<vmem>>, vector<1x8x1xf32>
    %124 = vector.shape_cast %123 : vector<1x8x1xf32> to vector<8x1xf32>
    %cst_26 = arith.constant dense<0.000000e+00> : vector<8xf32>
    %125 = vector.multi_reduction <add>, %115, %cst_26 [1] : vector<8x256xf32> to vector<8xf32>
    %126 = vector.shape_cast %125 : vector<8xf32> to vector<8x1xf32>
    %127 = arith.addf %124, %126 : vector<8x1xf32>
    %c0_27 = arith.constant 0 : index
    %c0_28 = arith.constant 0 : index
    %c0_29 = arith.constant 0 : index
    %128 = vector.load %arg7[%c0_27, %c0_28, %c0_29] : memref<1x8x2xf32, #tpu.memory_space<vmem>>, vector<1x8x1xf32>
    %129 = vector.shape_cast %128 : vector<1x8x1xf32> to vector<8x1xf32>
    %130 = vector.shape_cast %127 : vector<8x1xf32> to vector<1x8x1xf32>
    tpu.vector_store %arg7[%c0_27, %c0_28, %c0_29], %130 {strides = array<i32>} : memref<1x8x2xf32, #tpu.memory_space<vmem>>, vector<1x8x1xf32>,
    %c0_30 = arith.constant 0 : index
    %c0_31 = arith.constant 0 : index
    %c1 = arith.constant 1 : index
    %131 = vector.load %arg7[%c0_30, %c0_31, %c1] : memref<1x8x2xf32, #tpu.memory_space<vmem>>, vector<1x8x1xf32>
    %132 = vector.shape_cast %131 : vector<1x8x1xf32> to vector<8x1xf32>
    %133 = arith.mulf %115, %115 : vector<8x256xf32>
    %cst_32 = arith.constant dense<0.000000e+00> : vector<8xf32>
    %134 = vector.multi_reduction <add>, %133, %cst_32 [1] : vector<8x256xf32> to vector<8xf32>
    %135 = vector.shape_cast %134 : vector<8xf32> to vector<8x1xf32>
    %136 = arith.addf %132, %135 : vector<8x1xf32>
    %c0_33 = arith.constant 0 : index
    %c0_34 = arith.constant 0 : index
    %c1_35 = arith.constant 1 : index
    %137 = vector.load %arg7[%c0_33, %c0_34, %c1_35] : memref<1x8x2xf32, #tpu.memory_space<vmem>>, vector<1x8x1xf32>
    %138 = vector.shape_cast %137 : vector<1x8x1xf32> to vector<8x1xf32>
    %139 = vector.shape_cast %136 : vector<8x1xf32> to vector<1x8x1xf32>
    tpu.vector_store %arg7[%c0_33, %c0_34, %c1_35], %139 {strides = array<i32>} : memref<1x8x2xf32, #tpu.memory_space<vmem>>, vector<1x8x1xf32>,
    return
  }
  func.func @transform_0(%arg0: i32, %arg1: i32) -> (i32, i32, i32) {
    %c0_i32 = arith.constant 0 : i32
    %c0_i32_0 = arith.constant 0 : i32
    return %arg0, %c0_i32, %arg1 : i32, i32, i32
  }
  func.func @transform_1(%arg0: i32, %arg1: i32) -> (i32, i32, i32) {
    %c0_i32 = arith.constant 0 : i32
    %c0_i32_0 = arith.constant 0 : i32
    return %arg0, %c0_i32, %arg1 : i32, i32, i32
  }
  func.func @transform_2(%arg0: i32, %arg1: i32) -> (i32, i32) {
    %c0_i32 = arith.constant 0 : i32
    %c0_i32_0 = arith.constant 0 : i32
    %c0_i32_1 = arith.constant 0 : i32
    return %c0_i32, %c0_i32_0 : i32, i32
  }
  func.func @transform_3(%arg0: i32, %arg1: i32) -> (i32, i32) {
    %c0_i32 = arith.constant 0 : i32
    %c0_i32_0 = arith.constant 0 : i32
    %c0_i32_1 = arith.constant 0 : i32
    return %c0_i32, %c0_i32_0 : i32, i32
  }
  func.func @transform_4(%arg0: i32, %arg1: i32) -> (i32, i32, i32) {
    %c0_i32 = arith.constant 0 : i32
    %c0_i32_0 = arith.constant 0 : i32
    return %arg0, %c0_i32, %arg1 : i32, i32, i32
  }
  func.func @transform_5(%arg0: i32, %arg1: i32) -> (i32, i32, i32) {
    %c0_i32 = arith.constant 0 : i32
    %c0_i32_0 = arith.constant 0 : i32
    %c0_i32_1 = arith.constant 0 : i32
    return %arg0, %c0_i32, %c0_i32_0 : i32, i32, i32
  }
}

module attributes {stable_mosaic.version = 11 : i64} {
  func.func @_gn_silu_kernel(%arg0: i32, %arg1: i32, %arg2: memref<1x8x256xbf16, #tpu.memory_space<vmem>>, %arg3: memref<1x8x1xf32, #tpu.memory_space<vmem>>, %arg4: memref<1x8x1xf32, #tpu.memory_space<vmem>>, %arg5: memref<1x8x256xf32, #tpu.memory_space<vmem>>) attributes {dimension_semantics = [#tpu.dimension_semantics<parallel>, #tpu.dimension_semantics<parallel>], iteration_bounds = array<i64: 2, 1>, scalar_prefetch = 0 : i64, scratch_operands = 0 : i64, tpu.core_type = #tpu.core_type<tc>, window_params = [{transform_indices = @transform_0, window_bounds = array<i64: 1, 8, 256>}, {transform_indices = @transform_1, window_bounds = array<i64: 1, 8, 1>}, {transform_indices = @transform_2, window_bounds = array<i64: 1, 8, 1>}, {transform_indices = @transform_3, window_bounds = array<i64: 1, 8, 256>}]} {
    %c0 = arith.constant 0 : index
    %c0_0 = arith.constant 0 : index
    %c0_1 = arith.constant 0 : index
    %0 = vector.load %arg2[%c0, %c0_0, %c0_1] : memref<1x8x256xbf16, #tpu.memory_space<vmem>>, vector<1x8x256xbf16>
    %1 = vector.shape_cast %0 : vector<1x8x256xbf16> to vector<8x256xbf16>
    %2 = arith.extf %1 : vector<8x256xbf16> to vector<8x256xf32>
    %c0_2 = arith.constant 0 : index
    %c0_3 = arith.constant 0 : index
    %c0_4 = arith.constant 0 : index
    %3 = vector.load %arg3[%c0_2, %c0_3, %c0_4] : memref<1x8x1xf32, #tpu.memory_space<vmem>>, vector<1x8x1xf32>
    %4 = vector.shape_cast %3 : vector<1x8x1xf32> to vector<8x1xf32>
    %5 = vector.broadcast %4 : vector<8x1xf32> to vector<8x256xf32>
    %6 = arith.mulf %2, %5 : vector<8x256xf32>
    %c0_5 = arith.constant 0 : index
    %c0_6 = arith.constant 0 : index
    %c0_7 = arith.constant 0 : index
    %7 = vector.load %arg4[%c0_5, %c0_6, %c0_7] : memref<1x8x1xf32, #tpu.memory_space<vmem>>, vector<1x8x1xf32>
    %8 = vector.shape_cast %7 : vector<1x8x1xf32> to vector<8x1xf32>
    %9 = vector.broadcast %8 : vector<8x1xf32> to vector<8x256xf32>
    %10 = arith.addf %6, %9 : vector<8x256xf32>
    %11 = arith.negf %10 : vector<8x256xf32>
    %12 = math.exp %11 : vector<8x256xf32>
    %cst = arith.constant 1.000000e+00 : f32
    %13 = vector.broadcast %cst : f32 to vector<8x256xf32>
    %14 = arith.addf %13, %12 : vector<8x256xf32>
    %15 = arith.divf %13, %14 : vector<8x256xf32>
    %16 = arith.mulf %10, %15 : vector<8x256xf32>
    %c0_8 = arith.constant 0 : index
    %c0_9 = arith.constant 0 : index
    %c0_10 = arith.constant 0 : index
    %17 = vector.load %arg5[%c0_8, %c0_9, %c0_10] : memref<1x8x256xf32, #tpu.memory_space<vmem>>, vector<1x8x256xf32>
    %18 = vector.shape_cast %17 : vector<1x8x256xf32> to vector<8x256xf32>
    %19 = vector.shape_cast %16 : vector<8x256xf32> to vector<1x8x256xf32>
    tpu.vector_store %arg5[%c0_8, %c0_9, %c0_10], %19 {strides = array<i32>} : memref<1x8x256xf32, #tpu.memory_space<vmem>>, vector<1x8x256xf32>,
    return
  }
  func.func @transform_0(%arg0: i32, %arg1: i32) -> (i32, i32, i32) {
    %c0_i32 = arith.constant 0 : i32
    %c0_i32_0 = arith.constant 0 : i32
    return %arg0, %c0_i32, %arg1 : i32, i32, i32
  }
  func.func @transform_1(%arg0: i32, %arg1: i32) -> (i32, i32, i32) {
    %c0_i32 = arith.constant 0 : i32
    %c0_i32_0 = arith.constant 0 : i32
    %c0_i32_1 = arith.constant 0 : i32
    return %arg0, %c0_i32, %c0_i32_0 : i32, i32, i32
  }
  func.func @transform_2(%arg0: i32, %arg1: i32) -> (i32, i32, i32) {
    %c0_i32 = arith.constant 0 : i32
    %c0_i32_0 = arith.constant 0 : i32
    %c0_i32_1 = arith.constant 0 : i32
    return %arg0, %c0_i32, %c0_i32_0 : i32, i32, i32
  }
  func.func @transform_3(%arg0: i32, %arg1: i32) -> (i32, i32, i32) {
    %c0_i32 = arith.constant 0 : i32
    %c0_i32_0 = arith.constant 0 : i32
    return %arg0, %c0_i32, %arg1 : i32, i32, i32
  }
}

</mosaic_0001>

<llo_original>
// kernel: squeeze.4
$region0: #{squeeze.4}
  %s0 = inlined_call_operand.vmem [shape: f32[2,8], index: 0, kind: input, shape index: {}]
  %s1 = inlined_call_operand.vmem [shape: f32[2,2,4], index: 1, kind: output, shape index: {}]
  $region1: #{squeeze.4} parent=0
    #allocation0 [shape = 'u8[8192]{0}', space=vmem, size = 0x2000, scoped, tag = 'scoped mem for output reshape']
    #allocation1 [shape = 'u8[4096]{0}', space=vmem, size = 0x1000, scoped, tag = 'scoped mem for input reshape']
    %s3 = sshll.u32 1, 2
    %s4 = ssub.s32 %s3, 1
    %v5 = vld [vmem:[%s0] sm:%s4]
    %6 = vst [vmem:[#allocation1] sm:%s4] %v5
    %v7 = vld [vmem:[#allocation1] sm:$0x3]
    %vm8 = vcmask 31744
    %9 = vst.msk [vmem:[#allocation0] ss:$8 sm:$0x3] %vm8, %v7
    %v10 = vld [vmem:[#allocation1] sm:$0x3]
    %11 = vrot.lane.b32.xlu0 %v10, 124
    %v12 = vpop.permute.xlu0 %11
    %vm13 = vcmask 31744
    %s14 = scalar_lea.vmem [#allocation0], 1
    %15 = vst.msk [vmem:[%s14] ss:$8 sm:$0x3] %vm13, %v12
    %s17 = sshll.u32 1, 2
    %s18 = ssub.s32 %s17, 1
    %v20 = vld [vmem:[#allocation0] sm:%s18]
    %s21 = sshll.u32 1, 2
    %s22 = ssub.s32 %s21, 1
    %23 = vst [vmem:[%s1] sm:%s22] %v20
    %s24 = scalar_lea.vmem [#allocation0], 8
    %v25 = vld [vmem:[%s24] sm:%s18]
    %s26 = sshll.u32 1, 2
    %s27 = ssub.s32 %s26, 1
    %s28 = scalar_lea.vmem %s1, 2
    %29 = vst [vmem:[%s28] sm:%s27] %v25

// kernel: dsconv_forward.3
$region0: #{dsconv_forward.3}
  #allocation0 [shape = 'u32[]', space=smem, size = 0x4, offset = 0x4, fixed_abs, tag = 'smem constant byte address 0x4 - core index']
  #allocation1 [shape = 'u32[144,128]{1,0:T(1,128)}', space=vmem, size = 0x12000, scoped, tag = 'internal scratch']
  %s0 = inlined_call_operand.vmem [shape: bf16[2,8,256], index: 0, kind: input, shape index: {}]
  %s1 = inlined_call_operand.vmem [shape: f32[2,8,1], index: 1, kind: input, shape index: {}]
  %s2 = inlined_call_operand.vmem [shape: f32[2,8,1], index: 2, kind: input, shape index: {}]
  %s3 = inlined_call_operand.vmem [shape: f32[2,8,256], index: 3, kind: output, shape index: {}]
  %s4 = sld [smem:[#allocation0]]
  $region45: #{dsconv_forward.3} parent=0
    _
  %s6 = ssub.s32 1, %s4
  %s7 = scalar_select 0, %s6, %s4
  loop: start=0, step=1, limit=4
  $region2: #{dsconv_forward.3} parent=0 // loop_pre_header
    _
  $region3: #{dsconv_forward.3} parent=0 // loop_header
    %s9 = sphi 0, %s13
    %p10 = scmp.ge.s32.totalorder %s9, 4
    %s16 = sphi 0, %s28
    %s17 = sphi 0, %s24
    %s18 = sphi 0, %s16
    %s19 = sphi 0, %s17
    %s20 = sphi 0, %s18
    %s21 = sphi 0, %s19
    %s33 = sphi 0, %s35
    %s36 = sphi 0, %s33
    %s37 = sphi 0, %s36
    %s53 = sphi 0, %s37
    %s59 = sphi 0, %s61
    %s62 = sphi 0, %s59
    %s63 = sphi 0, %s62
    %s79 = sphi 0, %s63
    %s85 = sphi 0, %s87
    %s88 = sphi 0, %s85
    %s89 = sphi 0, %s88
    %s105 = sphi 0, %s89
    %s113 = sphi 0, %s115
    %s116 = sphi 0, %s113
    %s117 = sphi 0, %s116
    %s133 = sphi 0, %s117
  $region4: #{dsconv_forward.3} parent=0 // loop_header_branch
    %12 = sbr.rel (%p10) target = $region8
  $region5: #{dsconv_forward.3} parent=0 // loop_body
    %s14 = ssub.s32 %s9, 1
    %s15 = ssub.s32 %s9, 2
    %s22 = sadd.s32 1, %s17
    %p23 = scmp.ge.s32.totalorder %s22, 1
    %s24 = scalar_select %p23, 0, %s22
    %s25 = sadd.s32 1, %s16
    %s26 = scalar_select %p23, %s25, %s16
    %p27 = scmp.ge.s32.totalorder %s26, 2
    %s28 = scalar_select %p27, 0, %s26
    %s29 = ssub.s32 %s16, %s28
    %s30 = ssub.s32 %s17, %s24
    %s31 = sor.u32 %s29, %s30
    %p32 = scmp.eq.s32.totalorder %s31, 0
    %s34 = sadd.s32 %s33, 1
    %s35 = scalar_select %p32, %s33, %s34
    %p38 = pneg %p32
    %p39 = scmp.eq.s32.totalorder %s9, 1
    %p40 = por %p38, %p39
    %p41 = scmp.ne.s32.totalorder %s33, %s36
    %p42 = scmp.eq.s32.totalorder %s9, 0
    %p43 = por %p41, %p42
    %p44 = scmp.ne.s32.totalorder %s33, %s36
    %p45 = scmp.eq.s32.totalorder %s14, 1
    %p46 = por %p44, %p45
    %p47 = scmp.ne.s32.totalorder %s36, %s37
    %p48 = scmp.eq.s32.totalorder %s14, 0
    %p49 = por %p47, %p48
    %p50 = scmp.ne.s32.totalorder %s36, %s37
    %p51 = scmp.eq.s32.totalorder %s15, 1
    %p52 = por %p50, %p51
    %p54 = scmp.ne.s32.totalorder %s37, %s53
    %p55 = scmp.eq.s32.totalorder %s15, 0
    %p56 = por %p54, %p55
    %s57 = ssub.s32 %s16, %s28
    %p58 = scmp.eq.s32.totalorder %s57, 0
    %s60 = sadd.s32 %s59, 1
    %s61 = scalar_select %p58, %s59, %s60
    %p64 = pneg %p58
    %p65 = scmp.eq.s32.totalorder %s9, 1
    %p66 = por %p64, %p65
    %p67 = scmp.ne.s32.totalorder %s59, %s62
    %p68 = scmp.eq.s32.totalorder %s9, 0
    %p69 = por %p67, %p68
    %p70 = scmp.ne.s32.totalorder %s59, %s62
    %p71 = scmp.eq.s32.totalorder %s14, 1
    %p72 = por %p70, %p71
    %p73 = scmp.ne.s32.totalorder %s62, %s63
    %p74 = scmp.eq.s32.totalorder %s14, 0
    %p75 = por %p73, %p74
    %p76 = scmp.ne.s32.totalorder %s62, %s63
    %p77 = scmp.eq.s32.totalorder %s15, 1
    %p78 = por %p76, %p77
    %p80 = scmp.ne.s32.totalorder %s63, %s79
    %p81 = scmp.eq.s32.totalorder %s15, 0
    %p82 = por %p80, %p81
    %s83 = ssub.s32 %s16, %s28
    %p84 = scmp.eq.s32.totalorder %s83, 0
    %s86 = sadd.s32 %s85, 1
    %s87 = scalar_select %p84, %s85, %s86
    %p90 = pneg %p84
    %p91 = scmp.eq.s32.totalorder %s9, 1
    %p92 = por %p90, %p91
    %p93 = scmp.ne.s32.totalorder %s85, %s88
    %p94 = scmp.eq.s32.totalorder %s9, 0
    %p95 = por %p93, %p94
    %p96 = scmp.ne.s32.totalorder %s85, %s88
    %p97 = scmp.eq.s32.totalorder %s14, 1
    %p98 = por %p96, %p97
    %p99 = scmp.ne.s32.totalorder %s88, %s89
    %p100 = scmp.eq.s32.totalorder %s14, 0
    %p101 = por %p99, %p100
    %p102 = scmp.ne.s32.totalorder %s88, %s89
    %p103 = scmp.eq.s32.totalorder %s15, 1
    %p104 = por %p102, %p103
    %p106 = scmp.ne.s32.totalorder %s89, %s105
    %p107 = scmp.eq.s32.totalorder %s15, 0
    %p108 = por %p106, %p107
    %s109 = ssub.s32 %s16, %s28
    %s110 = ssub.s32 %s17, %s24
    %s111 = sor.u32 %s109, %s110
    %p112 = scmp.eq.s32.totalorder %s111, 0
    %s114 = sadd.s32 %s113, 1
    %s115 = scalar_select %p112, %s113, %s114
    %p118 = pneg %p112
    %p119 = scmp.eq.s32.totalorder %s9, 1
    %p120 = por %p118, %p119
    %p121 = scmp.ne.s32.totalorder %s113, %s116
    %p122 = scmp.eq.s32.totalorder %s9, 0
    %p123 = por %p121, %p122
    %p124 = scmp.ne.s32.totalorder %s113, %s116
    %p125 = scmp.eq.s32.totalorder %s14, 1
    %p126 = por %p124, %p125
    %p127 = scmp.ne.s32.totalorder %s116, %s117
    %p128 = scmp.eq.s32.totalorder %s14, 0
    %p129 = por %p127, %p128
    %p130 = scmp.ne.s32.totalorder %s116, %s117
    %p131 = scmp.eq.s32.totalorder %s15, 1
    %p132 = por %p130, %p131
    %p134 = scmp.ne.s32.totalorder %s117, %s133
    %p135 = scmp.eq.s32.totalorder %s15, 0
    %p136 = por %p134, %p135
    %p137 = scmp.le.s32.totalorder 1, %s9
    %p138 = scmp.lt.s32.totalorder %s9, 3
    %p139 = pnand %p137, %p138
    %p140 = pneg %p139
    // Predicated region
    $region9: #{dsconv_forward.3} parent=5 // pred_check
      _
    $region10: #{dsconv_forward.3} parent=5 // pred_check_branch
      %142 = sbr.rel (%p139) target = $region12
    $region11: #{dsconv_forward.3} parent=5 // pred_region
      %s143 = ssub.s32 %s9, 1
    $region12: #{dsconv_forward.3} parent=5 // pred_fallthru
      _
    %p144 = scmp.lt.s32.totalorder %s9, 2
    // Predicated region
    $region13: #{dsconv_forward.3} parent=5 // pred_check
      %p145 = pneg %p144
    $region14: #{dsconv_forward.3} parent=5 // pred_check_branch
      %147 = sbr.rel (%p145) target = $region16
    $region15: #{dsconv_forward.3} parent=5 // pred_region
      // Predicated region
      $region17: #{dsconv_forward.3} parent=15 // pred_check
        %p148 = pneg %p43
      $region18: #{dsconv_forward.3} parent=15 // pred_check_branch
        %150 = sbr.rel (%p148) target = $region20
      $region19: #{dsconv_forward.3} parent=15 // pred_region
        %s151 = smul.u32 2, %s17
        %p152 = scmp.lt.s32.totalorder %s16, 1
        %s153 = scalar_select %p152, %s16, 1
        %p154 = scmp.lt.s32.totalorder %s151, 1
        %s155 = scalar_select %p154, %s151, 1
        %s156 = smul.addr %s153, 2
        %s157 = sadd.s32 %s155, %s156
        %s158 = smul.addr %s157, 4
        %s159 = scalar_lea.vmem %s0, %s158
        %s160 = smul.u32 2, %s17
      $region20: #{dsconv_forward.3} parent=15 // pred_fallthru
        _
      // Predicated region
      $region21: #{dsconv_forward.3} parent=15 // pred_check
        %p161 = pneg %p69
      $region22: #{dsconv_forward.3} parent=15 // pred_check_branch
        %163 = sbr.rel (%p161) target = $region24
      $region23: #{dsconv_forward.3} parent=15 // pred_region
        %p164 = scmp.lt.s32.totalorder %s16, 1
        %s165 = scalar_select %p164, %s16, 1
        %s166 = smul.addr %s165, 8
        %s167 = scalar_lea.vmem %s1, %s166
      $region24: #{dsconv_forward.3} parent=15 // pred_fallthru
        _
      // Predicated region
      $region25: #{dsconv_forward.3} parent=15 // pred_check
        %p168 = pneg %p95
      $region26: #{dsconv_forward.3} parent=15 // pred_check_branch
        %170 = sbr.rel (%p168) target = $region28
      $region27: #{dsconv_forward.3} parent=15 // pred_region
        %p171 = scmp.lt.s32.totalorder %s16, 1
        %s172 = scalar_select %p171, %s16, 1
        %s173 = smul.addr %s172, 8
        %s174 = scalar_lea.vmem %s2, %s173
      $region28: #{dsconv_forward.3} parent=15 // pred_fallthru
        _
    $region16: #{dsconv_forward.3} parent=5 // pred_fallthru
      _
    %p175 = scmp.le.s32.totalorder 1, %s9
    %p176 = scmp.lt.s32.totalorder %s9, 3
    %p177 = pnand %p175, %p176
    %p178 = pneg %p177
    // Predicated region
    $region29: #{dsconv_forward.3} parent=5 // pred_check
      _
    $region30: #{dsconv_forward.3} parent=5 // pred_check_branch
      %180 = sbr.rel (%p177) target = $region32
    $region31: #{dsconv_forward.3} parent=5 // pred_region
      %s181 = ssub.s32 %s9, 1
      %s182 = smul.u32 2, %s19
      %p183 = scmp.lt.s32.totalorder %s18, 1
      %s184 = scalar_select %p183, %s18, 1
      %p185 = scmp.lt.s32.totalorder %s182, 1
      %s186 = scalar_select %p185, %s182, 1
      %s187 = smul.addr %s184, 2
      %s188 = sadd.s32 %s186, %s187
      %s189 = smul.addr %s188, 4
      %s190 = scalar_lea.vmem %s0, %s189
      %p191 = pneg %p49
      %p192 = pneg %p46
      %p193 = scmp.lt.s32.totalorder %s18, 1
      %s194 = scalar_select %p193, %s18, 1
      %s195 = smul.addr %s194, 8
      %s196 = scalar_lea.vmem %s1, %s195
      %p197 = pneg %p75
      %p198 = pneg %p72
      %p199 = scmp.lt.s32.totalorder %s18, 1
      %s200 = scalar_select %p199, %s18, 1
      %s201 = smul.addr %s200, 8
      %s202 = scalar_lea.vmem %s2, %s201
      %p203 = pneg %p101
      %p204 = pneg %p98
      %p205 = pneg %p129
      %p206 = pneg %p126
      %s207 = smul.u32 2, %s19
      %p208 = scmp.lt.s32.totalorder %s18, 1
      %s209 = scalar_select %p208, %s18, 1
      %p210 = scmp.lt.s32.totalorder %s207, 1
      %s211 = scalar_select %p210, %s207, 1
      %s212 = smul.addr %s209, 2
      %s213 = sadd.s32 %s211, %s212
      %s214 = smul.addr %s213, 8
      %s215 = scalar_lea.vmem %s3, %s214
      %s216 = smul.u32 2, %s19
      %p217 = scmp.lt.s32.totalorder %s18, 1
      %s218 = scalar_select %p217, %s18, 1
      %p219 = scmp.lt.s32.totalorder %s216, 1
      %s220 = scalar_select %p219, %s216, 1
      %s221 = smul.addr %s218, 2
      %s222 = sadd.s32 %s220, %s221
      %s223 = smul.addr %s222, 4
      %s224 = scalar_lea.vmem %s0, %s223
      %s225 = smul.u32 2, %s19
      %p226 = scmp.lt.s32.totalorder %s18, 1
      %s227 = scalar_select %p226, %s18, 1
      %s228 = smul.addr %s227, 8
      %s229 = scalar_lea.vmem %s1, %s228
      %p230 = scmp.lt.s32.totalorder %s18, 1
      %s231 = scalar_select %p230, %s18, 1
      %s232 = smul.addr %s231, 8
      %s233 = scalar_lea.vmem %s2, %s232
      %s234 = smul.u32 2, %s19
      %p235 = scmp.lt.s32.totalorder %s18, 1
      %s236 = scalar_select %p235, %s18, 1
      %p237 = scmp.lt.s32.totalorder %s234, 1
      %s238 = scalar_select %p237, %s234, 1
      %s239 = smul.addr %s236, 2
      %s240 = sadd.s32 %s238, %s239
      %s241 = smul.addr %s240, 8
      %s242 = scalar_lea.vmem %s3, %s241
      %s243 = smul.u32 2, %s19
      %v244 = vld [vmem:[%s224] sm:$0xff]
      %v245 = vunpack.c.l.bf16 %v244
      %v246 = vunpack.c.h.bf16 %v244
      %v247 = vld [vmem:[%s229] sm:$0xff]
      %249 = vset.pattern.permute.xlu0 0
      %250 = vperm.xlu0 %249, %v247
      %v251 = vpop.permute.xlu0 %250
      %v253 = vmul.f32 %v245, %v251
      %v254 = vmul.f32 %v246, %v251
      %v255 = vld [vmem:[%s233] sm:$0xff]
      %257 = vset.pattern.permute.xlu0 0
      %258 = vperm.xlu0 %257, %v255
      %v259 = vpop.permute.xlu0 %258
      %v261 = vadd.f32 %v253, %v259
      %v262 = vadd.f32 %v254, %v259
      %v263 = vxor.u32 %v261, 2147483648
      %v264 = vxor.u32 %v262, 2147483648
      %v265 = vmul.f32 %v263, 1.442695
      %v266 = vpow.pop %v265
      %v267 = vmul.f32 %v264, 1.442695
      %v268 = vpow.pop %v267
      %v269 = vadd.f32 %v266, 1.0
      %v270 = vadd.f32 %v268, 1.0
      %v271 = vrcp.pop %v269
      %v272 = vmul.f32 1.0, %v271
      %v273 = vrcp.pop %v270
      %v274 = vmul.f32 1.0, %v273
      %v275 = vmul.f32 %v261, %v272
      %v276 = vmul.f32 %v262, %v274
      %277 = vst [vmem:[%s242] sm:$0xff] %v275
      %278 = vst [vmem:[%s242 + $0x8] sm:$0xff] %v276
      %s279 = smul.u32 2, %s19
      %p280 = scmp.lt.s32.totalorder %s18, 1
      %s281 = scalar_select %p280, %s18, 1
      %p282 = scmp.lt.s32.totalorder %s279, 1
      %s283 = scalar_select %p282, %s279, 1
      %s284 = smul.addr %s281, 2
      %s285 = sadd.s32 %s283, %s284
      %s286 = smul.addr %s285, 8
      %s287 = scalar_lea.vmem %s3, %s286
      // Predicated region
      $region33: #{dsconv_forward.3} parent=31 // pred_check
        %p288 = pneg %p126
      $region34: #{dsconv_forward.3} parent=31 // pred_check_branch
        %290 = sbr.rel (%p288) target = $region36
      $region35: #{dsconv_forward.3} parent=31 // pred_region
        %s291 = smul.u32 2, %s19
      $region36: #{dsconv_forward.3} parent=31 // pred_fallthru
        _
    $region32: #{dsconv_forward.3} parent=5 // pred_fallthru
      _
    %p292 = scmp.le.s32.totalorder 2, %s9
    // Predicated region
    $region37: #{dsconv_forward.3} parent=5 // pred_check
      %p293 = pneg %p292
    $region38: #{dsconv_forward.3} parent=5 // pred_check_branch
      %295 = sbr.rel (%p293) target = $region40
    $region39: #{dsconv_forward.3} parent=5 // pred_region
      %s296 = ssub.s32 %s9, 2
      // Predicated region
      $region41: #{dsconv_forward.3} parent=39 // pred_check
        %p297 = pneg %p132
      $region42: #{dsconv_forward.3} parent=39 // pred_check_branch
        %299 = sbr.rel (%p297) target = $region44
      $region43: #{dsconv_forward.3} parent=39 // pred_region
        %s300 = smul.u32 2, %s21
        %p301 = scmp.lt.s32.totalorder %s20, 1
        %s302 = scalar_select %p301, %s20, 1
        %p303 = scmp.lt.s32.totalorder %s300, 1
        %s304 = scalar_select %p303, %s300, 1
        %s305 = smul.addr %s302, 2
        %s306 = sadd.s32 %s304, %s305
        %s307 = smul.addr %s306, 8
        %s308 = scalar_lea.vmem %s3, %s307
      $region44: #{dsconv_forward.3} parent=39 // pred_fallthru
        _
    $region40: #{dsconv_forward.3} parent=5 // pred_fallthru
      _
  $region6: #{dsconv_forward.3} parent=0 // loop_footer
    %s13 = sadd.s32 1, %s9
  $region7: #{dsconv_forward.3} parent=0 // loop_footer_branch
    %8 = sbr.rel target = $region3
  $region8: #{dsconv_forward.3} parent=0 // loop_exit
    _

// kernel: dsconv_forward.2
$region0: #{dsconv_forward.2}
  #allocation0 [shape = 'u32[]', space=smem, size = 0x4, offset = 0x4, fixed_abs, tag = 'smem constant byte address 0x4 - core index']
  #allocation1 [shape = 'u32[144,128]{1,0:T(1,128)}', space=vmem, size = 0x12000, scoped, tag = 'internal scratch']
  %s0 = inlined_call_operand.vmem [shape: bf16[2,48,256], index: 0, kind: input, shape index: {}]
  %s1 = inlined_call_operand.vmem [shape: f32[2,6,256], index: 1, kind: input, shape index: {}]
  %s2 = inlined_call_operand.vmem [shape: bf16[8,12], index: 2, kind: input, shape index: {}]
  %s3 = inlined_call_operand.vmem [shape: f32[8,1], index: 3, kind: input, shape index: {}]
  %s4 = inlined_call_operand.vmem [shape: bf16[2,8,256], index: 4, kind: output, shape index: {0}]
  %s5 = inlined_call_operand.vmem [shape: f32[2,8,2], index: 5, kind: output, shape index: {1}]
  %6 = xla_tuple %s4, %s5
  %s7 = sld [smem:[#allocation0]]
  $region61: #{dsconv_forward.2} parent=0
    _
  %s9 = ssub.s32 1, %s7
  %s10 = scalar_select 0, %s9, %s7
  loop: start=0, step=1, limit=4
  $region2: #{dsconv_forward.2} parent=0 // loop_pre_header
    _
  $region3: #{dsconv_forward.2} parent=0 // loop_header
    %s12 = sphi 0, %s16
    %p13 = scmp.ge.s32.totalorder %s12, 4
    %s19 = sphi 0, %s31
    %s20 = sphi 0, %s27
    %s21 = sphi 0, %s19
    %s22 = sphi 0, %s20
    %s23 = sphi 0, %s21
    %s24 = sphi 0, %s22
    %s36 = sphi 0, %s38
    %s39 = sphi 0, %s36
    %s40 = sphi 0, %s39
    %s56 = sphi 0, %s40
    %s64 = sphi 0, %s66
    %s67 = sphi 0, %s64
    %s68 = sphi 0, %s67
    %s84 = sphi 0, %s68
    %s88 = sphi 0, %s88
    %s90 = sphi 0, %s88
    %s91 = sphi 0, %s90
    %s105 = sphi 0, %s91
    %s109 = sphi 0, %s109
    %s111 = sphi 0, %s109
    %s112 = sphi 0, %s111
    %s126 = sphi 0, %s112
    %s134 = sphi 0, %s136
    %s137 = sphi 0, %s134
    %s138 = sphi 0, %s137
    %s154 = sphi 0, %s138
    %s160 = sphi 0, %s162
    %s163 = sphi 0, %s160
    %s164 = sphi 0, %s163
    %s180 = sphi 0, %s164
  $region4: #{dsconv_forward.2} parent=0 // loop_header_branch
    %15 = sbr.rel (%p13) target = $region8
  $region5: #{dsconv_forward.2} parent=0 // loop_body
    %s17 = ssub.s32 %s12, 1
    %s18 = ssub.s32 %s12, 2
    %s25 = sadd.s32 1, %s20
    %p26 = scmp.ge.s32.totalorder %s25, 1
    %s27 = scalar_select %p26, 0, %s25
    %s28 = sadd.s32 1, %s19
    %s29 = scalar_select %p26, %s28, %s19
    %p30 = scmp.ge.s32.totalorder %s29, 2
    %s31 = scalar_select %p30, 0, %s29
    %s32 = ssub.s32 %s19, %s31
    %s33 = ssub.s32 %s20, %s27
    %s34 = sor.u32 %s32, %s33
    %p35 = scmp.eq.s32.totalorder %s34, 0
    %s37 = sadd.s32 %s36, 1
    %s38 = scalar_select %p35, %s36, %s37
    %p41 = pneg %p35
    %p42 = scmp.eq.s32.totalorder %s12, 1
    %p43 = por %p41, %p42
    %p44 = scmp.ne.s32.totalorder %s36, %s39
    %p45 = scmp.eq.s32.totalorder %s12, 0
    %p46 = por %p44, %p45
    %p47 = scmp.ne.s32.totalorder %s36, %s39
    %p48 = scmp.eq.s32.totalorder %s17, 1
    %p49 = por %p47, %p48
    %p50 = scmp.ne.s32.totalorder %s39, %s40
    %p51 = scmp.eq.s32.totalorder %s17, 0
    %p52 = por %p50, %p51
    %p53 = scmp.ne.s32.totalorder %s39, %s40
    %p54 = scmp.eq.s32.totalorder %s18, 1
    %p55 = por %p53, %p54
    %p57 = scmp.ne.s32.totalorder %s40, %s56
    %p58 = scmp.eq.s32.totalorder %s18, 0
    %p59 = por %p57, %p58
    %s60 = ssub.s32 %s19, %s31
    %s61 = ssub.s32 %s20, %s27
    %s62 = sor.u32 %s60, %s61
    %p63 = scmp.eq.s32.totalorder %s62, 0
    %s65 = sadd.s32 %s64, 1
    %s66 = scalar_select %p63, %s64, %s65
    %p69 = pneg %p63
    %p70 = scmp.eq.s32.totalorder %s12, 1
    %p71 = por %p69, %p70
    %p72 = scmp.ne.s32.totalorder %s64, %s67
    %p73 = scmp.eq.s32.totalorder %s12, 0
    %p74 = por %p72, %p73
    %p75 = scmp.ne.s32.totalorder %s64, %s67
    %p76 = scmp.eq.s32.totalorder %s17, 1
    %p77 = por %p75, %p76
    %p78 = scmp.ne.s32.totalorder %s67, %s68
    %p79 = scmp.eq.s32.totalorder %s17, 0
    %p80 = por %p78, %p79
    %p81 = scmp.ne.s32.totalorder %s67, %s68
    %p82 = scmp.eq.s32.totalorder %s18, 1
    %p83 = por %p81, %p82
    %p85 = scmp.ne.s32.totalorder %s68, %s84
    %p86 = scmp.eq.s32.totalorder %s18, 0
    %p87 = por %p85, %p86
    %s89 = sadd.s32 %s88, 1
    %p92 = scmp.eq.s32.totalorder %s12, 1
    %p93 = scmp.ne.s32.totalorder %s88, %s90
    %p94 = scmp.eq.s32.totalorder %s12, 0
    %p95 = por %p93, %p94
    %p96 = scmp.ne.s32.totalorder %s88, %s90
    %p97 = scmp.eq.s32.totalorder %s17, 1
    %p98 = por %p96, %p97
    %p99 = scmp.ne.s32.totalorder %s90, %s91
    %p100 = scmp.eq.s32.totalorder %s17, 0
    %p101 = por %p99, %p100
    %p102 = scmp.ne.s32.totalorder %s90, %s91
    %p103 = scmp.eq.s32.totalorder %s18, 1
    %p104 = por %p102, %p103
    %p106 = scmp.ne.s32.totalorder %s91, %s105
    %p107 = scmp.eq.s32.totalorder %s18, 0
    %p108 = por %p106, %p107
    %s110 = sadd.s32 %s109, 1
    %p113 = scmp.eq.s32.totalorder %s12, 1
    %p114 = scmp.ne.s32.totalorder %s109, %s111
    %p115 = scmp.eq.s32.totalorder %s12, 0
    %p116 = por %p114, %p115
    %p117 = scmp.ne.s32.totalorder %s109, %s111
    %p118 = scmp.eq.s32.totalorder %s17, 1
    %p119 = por %p117, %p118
    %p120 = scmp.ne.s32.totalorder %s111, %s112
    %p121 = scmp.eq.s32.totalorder %s17, 0
    %p122 = por %p120, %p121
    %p123 = scmp.ne.s32.totalorder %s111, %s112
    %p124 = scmp.eq.s32.totalorder %s18, 1
    %p125 = por %p123, %p124
    %p127 = scmp.ne.s32.totalorder %s112, %s126
    %p128 = scmp.eq.s32.totalorder %s18, 0
    %p129 = por %p127, %p128
    %s130 = ssub.s32 %s19, %s31
    %s131 = ssub.s32 %s20, %s27
    %s132 = sor.u32 %s130, %s131
    %p133 = scmp.eq.s32.totalorder %s132, 0
    %s135 = sadd.s32 %s134, 1
    %s136 = scalar_select %p133, %s134, %s135
    %p139 = pneg %p133
    %p140 = scmp.eq.s32.totalorder %s12, 1
    %p141 = por %p139, %p140
    %p142 = scmp.ne.s32.totalorder %s134, %s137
    %p143 = scmp.eq.s32.totalorder %s12, 0
    %p144 = por %p142, %p143
    %p145 = scmp.ne.s32.totalorder %s134, %s137
    %p146 = scmp.eq.s32.totalorder %s17, 1
    %p147 = por %p145, %p146
    %p148 = scmp.ne.s32.totalorder %s137, %s138
    %p149 = scmp.eq.s32.totalorder %s17, 0
    %p150 = por %p148, %p149
    %p151 = scmp.ne.s32.totalorder %s137, %s138
    %p152 = scmp.eq.s32.totalorder %s18, 1
    %p153 = por %p151, %p152
    %p155 = scmp.ne.s32.totalorder %s138, %s154
    %p156 = scmp.eq.s32.totalorder %s18, 0
    %p157 = por %p155, %p156
    %s158 = ssub.s32 %s19, %s31
    %p159 = scmp.eq.s32.totalorder %s158, 0
    %s161 = sadd.s32 %s160, 1
    %s162 = scalar_select %p159, %s160, %s161
    %p165 = pneg %p159
    %p166 = scmp.eq.s32.totalorder %s12, 1
    %p167 = por %p165, %p166
    %p168 = scmp.ne.s32.totalorder %s160, %s163
    %p169 = scmp.eq.s32.totalorder %s12, 0
    %p170 = por %p168, %p169
    %p171 = scmp.ne.s32.totalorder %s160, %s163
    %p172 = scmp.eq.s32.totalorder %s17, 1
    %p173 = por %p171, %p172
    %p174 = scmp.ne.s32.totalorder %s163, %s164
    %p175 = scmp.eq.s32.totalorder %s17, 0
    %p176 = por %p174, %p175
    %p177 = scmp.ne.s32.totalorder %s163, %s164
    %p178 = scmp.eq.s32.totalorder %s18, 1
    %p179 = por %p177, %p178
    %p181 = scmp.ne.s32.totalorder %s164, %s180
    %p182 = scmp.eq.s32.totalorder %s18, 0
    %p183 = por %p181, %p182
    %p184 = scmp.le.s32.totalorder 1, %s12
    %p185 = scmp.lt.s32.totalorder %s12, 3
    %p186 = pnand %p184, %p185
    %p187 = pneg %p186
    // Predicated region
    $region9: #{dsconv_forward.2} parent=5 // pred_check
      _
    $region10: #{dsconv_forward.2} parent=5 // pred_check_branch
      %189 = sbr.rel (%p186) target = $region12
    $region11: #{dsconv_forward.2} parent=5 // pred_region
      %s190 = ssub.s32 %s12, 1
      // Predicated region
      $region13: #{dsconv_forward.2} parent=11 // pred_check
        %p191 = pneg %p101
      $region14: #{dsconv_forward.2} parent=11 // pred_check_branch
        %193 = sbr.rel (%p191) target = $region16
      $region15: #{dsconv_forward.2} parent=11 // pred_region
        _
      $region16: #{dsconv_forward.2} parent=11 // pred_fallthru
        _
      // Predicated region
      $region17: #{dsconv_forward.2} parent=11 // pred_check
        %p194 = pneg %p122
      $region18: #{dsconv_forward.2} parent=11 // pred_check_branch
        %196 = sbr.rel (%p194) target = $region20
      $region19: #{dsconv_forward.2} parent=11 // pred_region
        _
      $region20: #{dsconv_forward.2} parent=11 // pred_fallthru
        _
    $region12: #{dsconv_forward.2} parent=5 // pred_fallthru
      _
    %p197 = scmp.lt.s32.totalorder %s12, 2
    // Predicated region
    $region21: #{dsconv_forward.2} parent=5 // pred_check
      %p198 = pneg %p197
    $region22: #{dsconv_forward.2} parent=5 // pred_check_branch
      %200 = sbr.rel (%p198) target = $region24
    $region23: #{dsconv_forward.2} parent=5 // pred_region
      // Predicated region
      $region25: #{dsconv_forward.2} parent=23 // pred_check
        %p201 = pneg %p46
      $region26: #{dsconv_forward.2} parent=23 // pred_check_branch
        %203 = sbr.rel (%p201) target = $region28
      $region27: #{dsconv_forward.2} parent=23 // pred_region
        %s204 = smul.u32 2, %s20
        %p205 = scmp.lt.s32.totalorder %s19, 1
        %s206 = scalar_select %p205, %s19, 1
        %p207 = scmp.lt.s32.totalorder %s204, 1
        %s208 = scalar_select %p207, %s204, 1
        %s209 = smul.addr %s206, 12
        %s210 = sadd.s32 %s208, %s209
        %s211 = smul.addr %s210, 4
        %s212 = scalar_lea.vmem %s0, %s211
        %s213 = smul.u32 2, %s20
      $region28: #{dsconv_forward.2} parent=23 // pred_fallthru
        _
      // Predicated region
      $region29: #{dsconv_forward.2} parent=23 // pred_check
        %p214 = pneg %p74
      $region30: #{dsconv_forward.2} parent=23 // pred_check_branch
        %216 = sbr.rel (%p214) target = $region32
      $region31: #{dsconv_forward.2} parent=23 // pred_region
        %s217 = smul.u32 2, %s20
        %p218 = scmp.lt.s32.totalorder %s19, 1
        %s219 = scalar_select %p218, %s19, 1
        %p220 = scmp.lt.s32.totalorder %s217, 1
        %s221 = scalar_select %p220, %s217, 1
        %s222 = smul.addr %s219, 2
        %s223 = sadd.s32 %s221, %s222
        %s224 = smul.addr %s223, 8
        %s225 = scalar_lea.vmem %s1, %s224
        %s226 = smul.u32 2, %s20
      $region32: #{dsconv_forward.2} parent=23 // pred_fallthru
        _
    $region24: #{dsconv_forward.2} parent=5 // pred_fallthru
      _
    %p227 = scmp.le.s32.totalorder 1, %s12
    %p228 = scmp.lt.s32.totalorder %s12, 3
    %p229 = pnand %p227, %p228
    %p230 = pneg %p229
    // Predicated region
    $region33: #{dsconv_forward.2} parent=5 // pred_check
      _
    $region34: #{dsconv_forward.2} parent=5 // pred_check_branch
      %232 = sbr.rel (%p229) target = $region36
    $region35: #{dsconv_forward.2} parent=5 // pred_region
      %s233 = ssub.s32 %s12, 1
      %s234 = smul.u32 2, %s22
      %p235 = scmp.lt.s32.totalorder %s21, 1
      %s236 = scalar_select %p235, %s21, 1
      %p237 = scmp.lt.s32.totalorder %s234, 1
      %s238 = scalar_select %p237, %s234, 1
      %s239 = smul.addr %s236, 12
      %s240 = sadd.s32 %s238, %s239
      %s241 = smul.addr %s240, 4
      %s242 = scalar_lea.vmem %s0, %s241
      %p243 = pneg %p52
      %p244 = pneg %p49
      %s245 = smul.u32 2, %s22
      %p246 = scmp.lt.s32.totalorder %s21, 1
      %s247 = scalar_select %p246, %s21, 1
      %p248 = scmp.lt.s32.totalorder %s245, 1
      %s249 = scalar_select %p248, %s245, 1
      %s250 = smul.addr %s247, 2
      %s251 = sadd.s32 %s249, %s250
      %s252 = smul.addr %s251, 8
      %s253 = scalar_lea.vmem %s1, %s252
      %p254 = pneg %p80
      %p255 = pneg %p77
      %p256 = pneg %p101
      %p257 = pneg %p98
      %p258 = pneg %p122
      %p259 = pneg %p119
      %p260 = pneg %p150
      %p261 = pneg %p147
      %s262 = smul.u32 2, %s22
      %p263 = scmp.lt.s32.totalorder %s21, 1
      %s264 = scalar_select %p263, %s21, 1
      %p265 = scmp.lt.s32.totalorder %s262, 1
      %s266 = scalar_select %p265, %s262, 1
      %s267 = smul.addr %s264, 2
      %s268 = sadd.s32 %s266, %s267
      %s269 = smul.addr %s268, 4
      %s270 = scalar_lea.vmem %s4, %s269
      %p271 = pneg %p176
      %p272 = pneg %p173
      %p273 = scmp.lt.s32.totalorder %s21, 1
      %s274 = scalar_select %p273, %s21, 1
      %s275 = smul.addr %s274, 8
      %s276 = scalar_lea.vmem %s5, %s275
      %s277 = smul.u32 2, %s22
      %p278 = scmp.lt.s32.totalorder %s21, 1
      %s279 = scalar_select %p278, %s21, 1
      %p280 = scmp.lt.s32.totalorder %s277, 1
      %s281 = scalar_select %p280, %s277, 1
      %s282 = smul.addr %s279, 12
      %s283 = sadd.s32 %s281, %s282
      %s284 = smul.addr %s283, 4
      %s285 = scalar_lea.vmem %s0, %s284
      %s286 = smul.u32 2, %s22
      %s287 = smul.u32 2, %s22
      %p288 = scmp.lt.s32.totalorder %s21, 1
      %s289 = scalar_select %p288, %s21, 1
      %p290 = scmp.lt.s32.totalorder %s287, 1
      %s291 = scalar_select %p290, %s287, 1
      %s292 = smul.addr %s289, 2
      %s293 = sadd.s32 %s291, %s292
      %s294 = smul.addr %s293, 8
      %s295 = scalar_lea.vmem %s1, %s294
      %s296 = smul.u32 2, %s22
      %s297 = smul.u32 2, %s22
      %p298 = scmp.lt.s32.totalorder %s21, 1
      %s299 = scalar_select %p298, %s21, 1
      %p300 = scmp.lt.s32.totalorder %s297, 1
      %s301 = scalar_select %p300, %s297, 1
      %s302 = smul.addr %s299, 2
      %s303 = sadd.s32 %s301, %s302
      %s304 = smul.addr %s303, 4
      %s305 = scalar_lea.vmem %s4, %s304
      %s306 = smul.u32 2, %s22
      %p307 = scmp.lt.s32.totalorder %s21, 1
      %s308 = scalar_select %p307, %s21, 1
      %s309 = smul.addr %s308, 8
      %s310 = scalar_lea.vmem %s5, %s309
      %v312 = vld [vmem:[%s295] sm:$0x3f]
      %v313 = vld [vmem:[%s295 + $0x8] sm:$0x3f]
      %v314 = vfloor.f32 %v312
      %v315 = vfloor.f32 %v313
      %v316 = vadd.f32 %v314, 1.0
      %v317 = vadd.f32 %v315, 1.0
      %v318 = vmax.f32 %v314, 0.0
      %v319 = vmax.f32 %v315, 0.0
      %v320 = vmin.f32 %v318, 16.0
      %v321 = vmin.f32 %v319, 16.0
      %v322 = vmax.f32 %v316, 0.0
      %v323 = vmax.f32 %v317, 0.0
      %v324 = vmin.f32 %v322, 16.0
      %v325 = vmin.f32 %v323, 16.0
      %v326 = vsub.f32 %v324, %v312
      %v327 = vsub.f32 %v325, %v313
      %v330 = vrot.slane %v326, 3
      %v331 = vrot.slane %v327, 3
      %v334 = vmul.f32 %v326, %v330
      %v335 = vmul.f32 %v327, %v331
      %v336 = vsub.f32 %v312, %v320
      %v337 = vsub.f32 %v313, %v321
      %v340 = vrot.slane %v336, 3
      %v341 = vrot.slane %v337, 3
      %v344 = vmul.f32 %v326, %v340
      %v345 = vmul.f32 %v327, %v341
      %v346 = vmul.f32 %v336, %v330
      %v347 = vmul.f32 %v337, %v331
      %v348 = vmul.f32 %v336, %v340
      %v349 = vmul.f32 %v337, %v341
      %v350 = vld [vmem:[%s285] sm:$0xff]
      %v351 = vld [vmem:[%s285 + $0x8] sm:$0xff]
      %v352 = vld [vmem:[%s285 + $0x10] sm:$0xff]
      %v353 = vld [vmem:[%s285 + $0x18] sm:$0xff]
      %v354 = vld [vmem:[%s285 + $0x20] sm:$0xff]
      %v355 = vld [vmem:[%s285 + $0x28] sm:$0xff]
      %v356 = vunpack.c.l.bf16 %v350
      %v357 = vunpack.c.h.bf16 %v350
      %v358 = vunpack.c.l.bf16 %v351
      %v359 = vunpack.c.h.bf16 %v351
      %v360 = vunpack.c.l.bf16 %v353
      %v361 = vunpack.c.h.bf16 %v353
      %v362 = vunpack.c.l.bf16 %v354
      %v363 = vunpack.c.h.bf16 %v354
      %v364 = vlaneseq
      %v365 = vshrl.u32 %v364, 7
      %v366 = vsub.s32 0, %v365
      %v367 = vrot.slane %v334, %v366
      %v368 = vlaneseq
      %v369 = vshrl.u32 %v368, 7
      %v370 = vsub.s32 0, %v369
      %v371 = vrot.slane %v335, %v370
      %v372 = vmul.f32 %v356, %v367
      %v373 = vmul.f32 %v357, %v371
      %v374 = vlaneseq
      %v375 = vshrl.u32 %v374, 7
      %v376 = vsub.s32 0, %v375
      %v377 = vrot.slane %v344, %v376
      %v378 = vlaneseq
      %v379 = vshrl.u32 %v378, 7
      %v380 = vsub.s32 0, %v379
      %v381 = vrot.slane %v345, %v380
      %v382 = vmul.f32 %v358, %v377
      %v383 = vmul.f32 %v359, %v381
      %v386 = vrot.slane %v382, 4
      %v387 = vrot.slane %v383, 4
      %v390 = vadd.f32 %v372, %v386
      %v391 = vadd.f32 %v373, %v387
      %v392 = vlaneseq
      %v393 = vshrl.u32 %v392, 7
      %v394 = vsub.s32 0, %v393
      %v395 = vrot.slane %v346, %v394
      %v396 = vlaneseq
      %v397 = vshrl.u32 %v396, 7
      %v398 = vsub.s32 0, %v397
      %v399 = vrot.slane %v347, %v398
      %v400 = vmul.f32 %v360, %v395
      %v401 = vmul.f32 %v361, %v399
      %v402 = vadd.f32 %v390, %v400
      %v403 = vadd.f32 %v391, %v401
      %v404 = vlaneseq
      %v405 = vshrl.u32 %v404, 7
      %v406 = vsub.s32 0, %v405
      %v407 = vrot.slane %v348, %v406
      %v408 = vlaneseq
      %v409 = vshrl.u32 %v408, 7
      %v410 = vsub.s32 0, %v409
      %v411 = vrot.slane %v349, %v410
      %v412 = vmul.f32 %v362, %v407
      %v413 = vmul.f32 %v363, %v411
      %v416 = vrot.slane %v412, 4
      %v417 = vrot.slane %v413, 4
      %v420 = vadd.f32 %v402, %v416
      %v421 = vadd.f32 %v403, %v417
      %v422 = vunpack.c.l.bf16 %v352
      %v423 = vunpack.c.h.bf16 %v352
      %v424 = vunpack.c.l.bf16 %v355
      %v425 = vunpack.c.h.bf16 %v355
      %v426 = vlaneseq
      %v427 = vshrl.u32 %v426, 7
      %v428 = vsub.s32 1, %v427
      %v429 = vrot.slane %v334, %v428
      %v430 = vlaneseq
      %v431 = vshrl.u32 %v430, 7
      %v432 = vsub.s32 1, %v431
      %v433 = vrot.slane %v335, %v432
      %v434 = vmul.f32 %v356, %v429
      %v435 = vmul.f32 %v357, %v433
      %v436 = vlaneseq
      %v437 = vshrl.u32 %v436, 7
      %v438 = vsub.s32 1, %v437
      %v439 = vrot.slane %v344, %v438
      %v440 = vlaneseq
      %v441 = vshrl.u32 %v440, 7
      %v442 = vsub.s32 1, %v441
      %v443 = vrot.slane %v345, %v442
      %v444 = vmul.f32 %v422, %v439
      %v445 = vmul.f32 %v423, %v443
      %v448 = vrot.slane %v444, 4
      %v449 = vrot.slane %v445, 4
      %v452 = vadd.f32 %v434, %v448
      %v453 = vadd.f32 %v435, %v449
      %v454 = vlaneseq
      %v455 = vshrl.u32 %v454, 7
      %v456 = vsub.s32 1, %v455
      %v457 = vrot.slane %v346, %v456
      %v458 = vlaneseq
      %v459 = vshrl.u32 %v458, 7
      %v460 = vsub.s32 1, %v459
      %v461 = vrot.slane %v347, %v460
      %v462 = vmul.f32 %v360, %v457
      %v463 = vmul.f32 %v361, %v461
      %v464 = vadd.f32 %v452, %v462
      %v465 = vadd.f32 %v453, %v463
      %v466 = vlaneseq
      %v467 = vshrl.u32 %v466, 7
      %v468 = vsub.s32 1, %v467
      %v469 = vrot.slane %v348, %v468
      %v470 = vlaneseq
      %v471 = vshrl.u32 %v470, 7
      %v472 = vsub.s32 1, %v471
      %v473 = vrot.slane %v349, %v472
      %v474 = vmul.f32 %v424, %v469
      %v475 = vmul.f32 %v425, %v473
      %v478 = vrot.slane %v474, 4
      %v479 = vrot.slane %v475, 4
      %v482 = vadd.f32 %v464, %v478
      %v483 = vadd.f32 %v465, %v479
      %v484 = vlaneseq
      %v485 = vshrl.u32 %v484, 7
      %v486 = vsub.s32 2, %v485
      %v487 = vrot.slane %v334, %v486
      %v488 = vlaneseq
      %v489 = vshrl.u32 %v488, 7
      %v490 = vsub.s32 2, %v489
      %v491 = vrot.slane %v335, %v490
      %v492 = vmul.f32 %v358, %v487
      %v493 = vmul.f32 %v359, %v491
      %v494 = vlaneseq
      %v495 = vshrl.u32 %v494, 7
      %v496 = vsub.s32 2, %v495
      %v497 = vrot.slane %v344, %v496
      %v498 = vlaneseq
      %v499 = vshrl.u32 %v498, 7
      %v500 = vsub.s32 2, %v499
      %v501 = vrot.slane %v345, %v500
      %v502 = vmul.f32 %v422, %v497
      %v503 = vmul.f32 %v423, %v501
      %v506 = vrot.slane %v502, 4
      %v507 = vrot.slane %v503, 4
      %v510 = vadd.f32 %v492, %v506
      %v511 = vadd.f32 %v493, %v507
      %v512 = vlaneseq
      %v513 = vshrl.u32 %v512, 7
      %v514 = vsub.s32 2, %v513
      %v515 = vrot.slane %v346, %v514
      %v516 = vlaneseq
      %v517 = vshrl.u32 %v516, 7
      %v518 = vsub.s32 2, %v517
      %v519 = vrot.slane %v347, %v518
      %v520 = vmul.f32 %v362, %v515
      %v521 = vmul.f32 %v363, %v519
      %v522 = vadd.f32 %v510, %v520
      %v523 = vadd.f32 %v511, %v521
      %v524 = vlaneseq
      %v525 = vshrl.u32 %v524, 7
      %v526 = vsub.s32 2, %v525
      %v527 = vrot.slane %v348, %v526
      %v528 = vlaneseq
      %v529 = vshrl.u32 %v528, 7
      %v530 = vsub.s32 2, %v529
      %v531 = vrot.slane %v349, %v530
      %v532 = vmul.f32 %v424, %v527
      %v533 = vmul.f32 %v425, %v531
      %v536 = vrot.slane %v532, 4
      %v537 = vrot.slane %v533, 4
      %v540 = vadd.f32 %v522, %v536
      %v541 = vadd.f32 %v523, %v537
      %vm542 = vcmask 1043456
      %v543 = vsel %vm542, %v420, %v482
      %v544 = vsel %vm542, %v421, %v483
      %v545 = vld [vmem:[%s2] sm:$0xf]
      %v546 = vpack.c.bf16 %v540, %v543
      %v547 = vpack.c.bf16 %v541, %v544
      %v548 = vld [vmem:[%s3] sm:$0xff]
      %550 = vset.pattern.permute.xlu0 0
      %551 = vperm.xlu0 %550, %v548
      %v552 = vpop.permute.xlu0 %551
      %vm554 = vcmask 97280
      %v556 = vsel %vm554, %v545, 0
      %vm558 = vcmask 1045504
      %v560 = vsel %vm558, %v546, 0
      %v563 = vsel %vm558, %v547, 0
      %565 = vmatprep.subr.bf16.mxu0 0
      %566 = vmatpush1.bf16.msra.mxu0 0
      %567 = vmatprep.subr.bf16.mxu0 0
      %568 = vmatpush1.bf16.msra.mxu0 0
      %569 = vmatprep.subr.bf16.mxu0 0
      %570 = vmatpush1.bf16.msra.mxu0 0
      %571 = vmatprep.subr.bf16.mxu0 0
      %572 = vmatpush1.bf16.msra.mxu0 0
      %573 = vmatprep.subr.bf16.mxu0 0
      %574 = vmatpush1.bf16.msra.mxu0 0
      %575 = vmatprep.subr.bf16.mxu0 0
      %576 = vmatpush1.bf16.msra.mxu0 0
      %577 = vmatprep.subr.bf16.mxu0 0
      %578 = vmatpush1.bf16.msra.mxu0 0
      %579 = vmatprep.subr.bf16.mxu0 %v563
      %580 = vmatpush1.bf16.msra.mxu0 %v560
      %581 = vmatprep.subr.bf16.mxu0 0
      %582 = vmatpush2.bf16.msra.mxu0 0
      %583 = vmatprep.subr.bf16.mxu0 0
      %584 = vmatpush2.bf16.msra.mxu0 0
      %585 = vmatprep.subr.bf16.mxu0 0
      %586 = vmatpush2.bf16.msra.mxu0 0
      %587 = vmatprep.subr.bf16.mxu0 0
      %588 = vmatpush2.bf16.msra.mxu0 0
      %589 = vmatprep.subr.bf16.mxu0 0
      %590 = vmatpush2.bf16.msra.mxu0 0
      %591 = vmatprep.subr.bf16.mxu0 0
      %592 = vmatpush2.bf16.msra.mxu0 0
      %593 = vmatprep.subr.bf16.mxu0 0
      %594 = vmatpush2.bf16.msra.mxu0 0
      %595 = vmatprep.subr.bf16.mxu0 0
      %596 = vmatpush2.bf16.msra.mxu0 0
      %597 = vmatprep.mubr.bf16.mxu0 0
      %598 = vmatmul.mubr.bf16.gmra.mxu0 %v556
      %v599 = vpop.f32.mrf.mxu0
      %v600 = vadd.f32 %v552, %v599
      %v601 = vpop.f32.mrf.mxu0
      %v602 = vadd.f32 %v552, %v601
      %v603 = vpop.f32.mrf.mxu0
      %v604 = vpop.f32.mrf.mxu0
      %605 = vdwg.mxu0
      %v606 = vpack.c.bf16 %v600, %v600
      %v607 = vpack.c.bf16 %v602, %v602
      %v610 = vunpack.c.l.b16 %v606
      %v611 = vunpack.c.l.b16 %v607
      %v612 = vpack.c.b16 %v611, %v610
      %614 = vst [vmem:[%s305] sm:$0xff] %v612
      %p615 = scmp.eq.s32.totalorder %s22, 0
      // Predicated region
      $region37: #{dsconv_forward.2} parent=35 // pred_check
        %p616 = pneg %p615
      $region38: #{dsconv_forward.2} parent=35 // pred_check_branch
        %618 = sbr.rel (%p616) target = $region40
      $region39: #{dsconv_forward.2} parent=35 // pred_region
        %vm619 = vcmask 15360
        %620 = vst.msk [vmem:[%s310] sm:$0xff] %vm619, 0.0
      $region40: #{dsconv_forward.2} parent=35 // pred_fallthru
        _
      %v621 = vld [vmem:[%s310] sm:$0xff]
      %v622 = vadd.f32 %v600, %v602
      %623 = vadd.xlane.f32.xlu0 %v622
      %v624 = vpop.xlane.xlu0 %623
      %v625 = vadd.f32 %v621, %v624
      %vm626 = vcmask 7168
      %627 = vst.msk [vmem:[%s310] sm:$0xff] %vm626, %v625
      %v628 = vld [vmem:[%s310] sm:$0xff]
      %v629 = vmul.f32 %v600, %v600
      %v630 = vmul.f32 %v602, %v602
      %v631 = vadd.f32 %v629, %v630
      %632 = vadd.xlane.f32.xlu0 %v631
      %v633 = vpop.xlane.xlu0 %632
      %v634 = vadd.f32 %v628, %v633
      %vm635 = vcmask 15368
      %636 = vst.msk [vmem:[%s310] sm:$0xff] %vm635, %v634
      %s637 = smul.u32 2, %s22
      %p638 = scmp.lt.s32.totalorder %s21, 1
      %s639 = scalar_select %p638, %s21, 1
      %p640 = scmp.lt.s32.totalorder %s637, 1
      %s641 = scalar_select %p640, %s637, 1
      %s642 = smul.addr %s639, 2
      %s643 = sadd.s32 %s641, %s642
      %s644 = smul.addr %s643, 4
      %s645 = scalar_lea.vmem %s4, %s644
      %p646 = scmp.lt.s32.totalorder %s21, 1
      %s647 = scalar_select %p646, %s21, 1
      %s648 = smul.addr %s647, 8
      %s649 = scalar_lea.vmem %s5, %s648
      // Predicated region
      $region41: #{dsconv_forward.2} parent=35 // pred_check
        %p650 = pneg %p147
      $region42: #{dsconv_forward.2} parent=35 // pred_check_branch
        %652 = sbr.rel (%p650) target = $region44
      $region43: #{dsconv_forward.2} parent=35 // pred_region
        %s653 = smul.u32 2, %s22
      $region44: #{dsconv_forward.2} parent=35 // pred_fallthru
        _
      // Predicated region
      $region45: #{dsconv_forward.2} parent=35 // pred_check
        %p654 = pneg %p173
      $region46: #{dsconv_forward.2} parent=35 // pred_check_branch
        %656 = sbr.rel (%p654) target = $region48
      $region47: #{dsconv_forward.2} parent=35 // pred_region
        _
      $region48: #{dsconv_forward.2} parent=35 // pred_fallthru
        _
    $region36: #{dsconv_forward.2} parent=5 // pred_fallthru
      _
    %p657 = scmp.le.s32.totalorder 2, %s12
    // Predicated region
    $region49: #{dsconv_forward.2} parent=5 // pred_check
      %p658 = pneg %p657
    $region50: #{dsconv_forward.2} parent=5 // pred_check_branch
      %660 = sbr.rel (%p658) target = $region52
    $region51: #{dsconv_forward.2} parent=5 // pred_region
      %s661 = ssub.s32 %s12, 2
      // Predicated region
      $region53: #{dsconv_forward.2} parent=51 // pred_check
        %p662 = pneg %p153
      $region54: #{dsconv_forward.2} parent=51 // pred_check_branch
        %664 = sbr.rel (%p662) target = $region56
      $region55: #{dsconv_forward.2} parent=51 // pred_region
        %s665 = smul.u32 2, %s24
        %p666 = scmp.lt.s32.totalorder %s23, 1
        %s667 = scalar_select %p666, %s23, 1
        %p668 = scmp.lt.s32.totalorder %s665, 1
        %s669 = scalar_select %p668, %s665, 1
        %s670 = smul.addr %s667, 2
        %s671 = sadd.s32 %s669, %s670
        %s672 = smul.addr %s671, 4
        %s673 = scalar_lea.vmem %s4, %s672
      $region56: #{dsconv_forward.2} parent=51 // pred_fallthru
        _
      // Predicated region
      $region57: #{dsconv_forward.2} parent=51 // pred_check
        %p674 = pneg %p179
      $region58: #{dsconv_forward.2} parent=51 // pred_check_branch
        %676 = sbr.rel (%p674) target = $region60
      $region59: #{dsconv_forward.2} parent=51 // pred_region
        %p677 = scmp.lt.s32.totalorder %s23, 1
        %s678 = scalar_select %p677, %s23, 1
        %s679 = smul.addr %s678, 8
        %s680 = scalar_lea.vmem %s5, %s679
      $region60: #{dsconv_forward.2} parent=51 // pred_fallthru
        _
    $region52: #{dsconv_forward.2} parent=5 // pred_fallthru
      _
  $region6: #{dsconv_forward.2} parent=0 // loop_footer
    %s16 = sadd.s32 1, %s12
  $region7: #{dsconv_forward.2} parent=0 // loop_footer_branch
    %11 = sbr.rel target = $region3
  $region8: #{dsconv_forward.2} parent=0 // loop_exit
    _

</llo_original>
